<compile_context>
chip_gen: v6e
topology: v6e:2x2x1
jax: 0.10.0
libtpu: 0.0.40
codegen_flags: <defaults>
</compile_context>

<pallas_src>
import jax
import jax.numpy as jnp
from jax import lax
from jax.experimental import pallas as pl
from jax.experimental.pallas import tpu as pltpu


_VMEM_LIMIT_BYTES = 48 * 1024 * 1024   # headroom below v7x's 64 MiB physical VMEM


def _pick_tile(dim, pref, align):
    """Largest tile <= pref that divides dim and is a multiple of align; else full dim."""
    if dim <= pref:
        return dim
    t = (pref // align) * align
    while t >= align:
        if dim % t == 0:
            return t
        t -= align
    return dim


def _pick_chunk(dim, pref):
    """Largest chunk <= pref dividing dim (no alignment constraint on leading dim)."""
    if dim <= pref:
        return dim
    for c in range(pref, 0, -1):
        if dim % c == 0:
            return c
    return dim


# ----------------------------------------------------------------------------
# Tiled linear kernel: o = x @ W + b    (K kept resident, M/N tiled, pipelined)
# Used for (a) the hoisted LSTM input projection and (b) the vocab projection.
# ----------------------------------------------------------------------------
def linear_kernel(x_ref, w_ref, b_ref, o_ref):
    o_ref[...] = (jnp.dot(x_ref[...], w_ref[...],
                          preferred_element_type=jnp.float32)
                  + b_ref[...])


def linear(x2d, w_t, b, *, tm_pref=256, tn_pref=512):
    M, K = x2d.shape
    N = w_t.shape[1]
    tm = _pick_tile(M, tm_pref, 8)      # sublane-aligned M tiles
    tn = _pick_tile(N, tn_pref, 128)    # lane-dense N tiles (unmasked vst)
    grid = (M // tm, N // tn)
    return pl.pallas_call(
        linear_kernel,
        out_shape=jax.ShapeDtypeStruct((M, N), jnp.float32),
        grid_spec=pltpu.PrefetchScalarGridSpec(
            num_scalar_prefetch=0,
            grid=grid,
            in_specs=[
                pl.BlockSpec((tm, K), lambda i, j: (i, 0)),
                pl.BlockSpec((K, tn), lambda i, j: (0, j)),
                pl.BlockSpec((1, tn), lambda i, j: (0, j)),
            ],
            out_specs=pl.BlockSpec((tm, tn), lambda i, j: (i, j)),
        ),
        compiler_params=pltpu.CompilerParams(
            dimension_semantics=("parallel", "parallel"),
            vmem_limit_bytes=_VMEM_LIMIT_BYTES,
        ),
    )(x2d, w_t, b)


# ----------------------------------------------------------------------------
# Recurrent LSTM kernel: consumes pre-projected gates gx[t] = x_t @ W_ih^T + b,
# streams the sequence in T-chunks (grid axis), carries h/c in VMEM scratch.
# Gate ordering is PyTorch's (i, f, g, o).
# ----------------------------------------------------------------------------
def lstm_recurrent_kernel(gx_ref, h0_ref, c0_ref, whh_ref,
                          y_ref, hT_ref, cT_ref,
                          h_scratch, c_scratch):
    # gx_ref:  (TC, B, 4H)  input-projected gates (+ fused bias) for this chunk
    # h0/c0:   (B, H)       whh_ref: (H, 4H)
    # y_ref:   (TC, B, H)   hT/cT:   (B, H)
    H = h0_ref.shape[-1]
    TC = gx_ref.shape[0]

    @pl.when(pl.program_id(0) == 0)
    def _():
        h_scratch[...] = h0_ref[...]
        c_scratch[...] = c0_ref[...]

    def step(t, carry):
        # Only the unavoidable recurrent matmul lives in the serial loop.
        gates = gx_ref[t] + jnp.dot(h_scratch[...], whh_ref[...],
                                    preferred_element_type=jnp.float32)
        i_g = jax.nn.sigmoid(gates[:, 0 * H:1 * H])
        f_g = jax.nn.sigmoid(gates[:, 1 * H:2 * H])
        g_g = jnp.tanh(gates[:, 2 * H:3 * H])
        o_g = jax.nn.sigmoid(gates[:, 3 * H:4 * H])
        c_new = f_g * c_scratch[...] + i_g * g_g
        h_new = o_g * jnp.tanh(c_new)
        c_scratch[...] = c_new
        h_scratch[...] = h_new
        y_ref[t] = h_new
        return carry

    # Unrolled so the LLO scheduler can overlap step t+1's MXU push with step t's
    # VPU/EUP gate math.
    lax.fori_loop(0, TC, step, 0, unroll=True)

    # Resident output block (same block index every grid step) — flushed at grid end.
    hT_ref[...] = h_scratch[...]
    cT_ref[...] = c_scratch[...]


def lstm_layer(gx, h0, c0, w_hh_t, *, chunk_pref=32):
    T, B, G = gx.shape          # G = 4H
    H = h0.shape[-1]
    t_chunk = _pick_chunk(T, chunk_pref)
    grid = (T // t_chunk,)
    out_shapes = (
        jax.ShapeDtypeStruct((T, B, H), jnp.float32),   # full hidden sequence
        jax.ShapeDtypeStruct((B, H), jnp.float32),      # final h
        jax.ShapeDtypeStruct((B, H), jnp.float32),      # final c
    )
    return pl.pallas_call(
        lstm_recurrent_kernel,
        out_shape=out_shapes,
        grid_spec=pltpu.PrefetchScalarGridSpec(
            num_scalar_prefetch=0,
            grid=grid,
            in_specs=[
                pl.BlockSpec((t_chunk, B, G), lambda i: (i, 0, 0)),   # streamed gx chunk
                pl.BlockSpec((B, H), lambda i: (0, 0)),               # h0 (resident)
                pl.BlockSpec((B, H), lambda i: (0, 0)),               # c0 (resident)
                pl.BlockSpec((H, G), lambda i: (0, 0)),               # W_hh^T (resident)
            ],
            out_specs=[
                pl.BlockSpec((t_chunk, B, H), lambda i: (i, 0, 0)),   # streamed y chunk
                pl.BlockSpec((B, H), lambda i: (0, 0)),               # final h
                pl.BlockSpec((B, H), lambda i: (0, 0)),               # final c
            ],
            scratch_shapes=[
                pltpu.VMEM((B, H), jnp.float32),   # h carry (persists across grid)
                pltpu.VMEM((B, H), jnp.float32),   # c carry
            ],
        ),
        compiler_params=pltpu.CompilerParams(
            dimension_semantics=("arbitrary",),    # sequential carry over T-chunks
            vmem_limit_bytes=_VMEM_LIMIT_BYTES,
        ),
    )(gx, h0, c0, w_hh_t)


# ----------------------------------------------------------------------------
# Full model forward.  Embedding gather is glue in plain JAX; the hoisted input
# projection, the recurrence, and the vocab projection run in Pallas kernels.
# ----------------------------------------------------------------------------
def model_forward(params, tokens, prev_state):
    """tokens: (T, B) int32; prev_state: (h0, c0) each (L, B, H)."""
    h0_all, c0_all = prev_state
    T, B = tokens.shape
    x = jnp.take(params["embedding"], tokens, axis=0)          # (T, B, E)

    h_finals, c_finals = [], []
    for layer_idx, lp in enumerate(params["lstm"]):
        D_in = x.shape[-1]
        # Hoisted input projection: one big pipelined matmul over all timesteps,
        # with (b_ih + b_hh) fused here so the recurrent step has no bias add.
        gx = linear(x.reshape(T * B, D_in), lp["w_ih_t"], lp["bias"])
        gx = gx.reshape(T, B, -1)                              # (T, B, 4H)
        x, h_T, c_T = lstm_layer(gx, h0_all[layer_idx], c0_all[layer_idx],
                                 lp["w_hh_t"])
        h_finals.append(h_T)
        c_finals.append(c_T)
        # TODO(synk): fuse adjacent layers / prefetch next-layer weights (P10) to
        # avoid the (T,B,H) HBM round trip between layers.

    # TODO(synk): nn.Dropout is identity in eval mode; training-mode stochastic
    # dropout (pltpu.prng_random_bits mask) is omitted here.

    T_, B_, H = x.shape
    logits2d = linear(x.reshape(T_ * B_, H), params["w_out_t"], params["b_out"])
    logits = logits2d.reshape(T_, B_, -1)

    state = (jnp.stack(h_finals, axis=0), jnp.stack(c_finals, axis=0))
    return logits, state


# ----------------------------------------------------------------------------
# Pure-JAX reference (for correctness check only).
# ----------------------------------------------------------------------------
def reference_forward(params, tokens, prev_state):
    h0_all, c0_all = prev_state
    x = jnp.take(params["embedding"], tokens, axis=0)
    H = h0_all.shape[-1]
    h_fin, c_fin = [], []
    for li, lp in enumerate(params["lstm"]):
        w_ih_t, w_hh_t, bias = lp["w_ih_t"], lp["w_hh_t"], lp["bias"]

        def step(carry, x_t, w_ih_t=w_ih_t, w_hh_t=w_hh_t, bias=bias):
            h, c = carry
            gates = x_t @ w_ih_t + h @ w_hh_t + bias
            i = jax.nn.sigmoid(gates[:, 0 * H:1 * H])
            f = jax.nn.sigmoid(gates[:, 1 * H:2 * H])
            g = jnp.tanh(gates[:, 2 * H:3 * H])
            o = jax.nn.sigmoid(gates[:, 3 * H:4 * H])
            c = f * c + i * g
            h = o * jnp.tanh(c)
            return (h, c), h

        (hT, cT), ys = lax.scan(step, (h0_all[li], c0_all[li]), x)
        x = ys
        h_fin.append(hT)
        c_fin.append(cT)
    logits = x @ params["w_out_t"] + params["b_out"]
    return logits, (jnp.stack(h_fin), jnp.stack(c_fin))


def init_params(key, vocab_size, embedding_dim, hidden_size, num_layers):
    keys = jax.random.split(key, 3 + 4 * num_layers)
    k = 1.0 / jnp.sqrt(hidden_size)
    params = {}
    params["embedding"] = jax.random.normal(
        keys[0], (vocab_size, embedding_dim), jnp.float32)

    lstm_params = []
    for layer in range(num_layers):
        in_dim = embedding_dim if layer == 0 else hidden_size
        kw = keys[3 + 4 * layer:3 + 4 * (layer + 1)]
        w_ih = jax.random.uniform(kw[0], (4 * hidden_size, in_dim),
                                  jnp.float32, -k, k)
        w_hh = jax.random.uniform(kw[1], (4 * hidden_size, hidden_size),
                                  jnp.float32, -k, k)
        b_ih = jax.random.uniform(kw[2], (4 * hidden_size,), jnp.float32, -k, k)
        b_hh = jax.random.uniform(kw[3], (4 * hidden_size,), jnp.float32, -k, k)
        lstm_params.append({
            "w_ih_t": w_ih.T,                              # (in_dim, 4H)
            "w_hh_t": w_hh.T,                              # (H, 4H)
            "bias": (b_ih + b_hh).reshape(1, 4 * hidden_size),
        })
    params["lstm"] = lstm_params

    w_out = jax.random.uniform(keys[1], (vocab_size, hidden_size),
                               jnp.float32, -k, k)
    b_out = jax.random.uniform(keys[2], (vocab_size,), jnp.float32, -k, k)
    params["w_out_t"] = w_out.T                            # (H, V)
    params["b_out"] = b_out.reshape(1, vocab_size)
    return params


if __name__ == "__main__":
    vocab_size = 32
    embedding_dim = 16
    hidden_size = 32
    num_layers = 2
    seq_len = 8
    batch = 4

    key = jax.random.PRNGKey(0)
    k_params, k_tok = jax.random.split(key)

    params = init_params(k_params, vocab_size, embedding_dim,
                         hidden_size, num_layers)

    tokens = jax.random.randint(k_tok, (seq_len, batch), 0, vocab_size,
                                dtype=jnp.int32)
    h0 = jnp.zeros((num_layers, batch, hidden_size), jnp.float32)
    c0 = jnp.zeros((num_layers, batch, hidden_size), jnp.float32)

    logits, (h_n, c_n) = jax.jit(model_forward)(params, tokens, (h0, c0))
    jax.block_until_ready((logits, h_n, c_n))

    assert logits.shape == (seq_len, batch, vocab_size)
    assert h_n.shape == (num_layers, batch, hidden_size)
    assert c_n.shape == (num_layers, batch, hidden_size)

    # Numerical check against a pure-JAX reference LSTM.
    ref_logits, (ref_h, ref_c) = jax.jit(reference_forward)(
        params, tokens, (h0, c0))
    jax.block_until_ready((ref_logits, ref_h, ref_c))
    assert jnp.allclose(logits, ref_logits, rtol=1e-3, atol=1e-3)
    assert jnp.allclose(h_n, ref_h, rtol=1e-3, atol=1e-3)
    assert jnp.allclose(c_n, ref_c, rtol=1e-3, atol=1e-3)

    print("KERNEL_OK")
</pallas_src>

<mosaic_0001>
module attributes {stable_mosaic.version = 11 : i64} {
  func.func @lstm_recurrent_kernel(%arg0: i32, %arg1: memref<8x4x128xf32, #tpu.memory_space<vmem>>, %arg2: memref<4x32xf32, #tpu.memory_space<vmem>>, %arg3: memref<4x32xf32, #tpu.memory_space<vmem>>, %arg4: memref<32x128xf32, #tpu.memory_space<vmem>>, %arg5: memref<8x4x32xf32, #tpu.memory_space<vmem>>, %arg6: memref<4x32xf32, #tpu.memory_space<vmem>>, %arg7: memref<4x32xf32, #tpu.memory_space<vmem>>, %arg8: memref<4x32xf32, #tpu.memory_space<vmem>>, %arg9: memref<4x32xf32, #tpu.memory_space<vmem>>) attributes {dimension_semantics = [#tpu.dimension_semantics<arbitrary>], iteration_bounds = array<i64: 1>, scalar_prefetch = 0 : i64, scratch_operands = 2 : i64, tpu.core_type = #tpu.core_type<tc>, window_params = [{transform_indices = @transform_0, window_bounds = array<i64: 8, 4, 128>}, {pipeline_mode = #tpu.pipeline_mode<synchronous>, transform_indices = @transform_1, window_bounds = array<i64: 4, 32>}, {pipeline_mode = #tpu.pipeline_mode<synchronous>, transform_indices = @transform_2, window_bounds = array<i64: 4, 32>}, {pipeline_mode = #tpu.pipeline_mode<synchronous>, transform_indices = @transform_3, window_bounds = array<i64: 32, 128>}, {transform_indices = @transform_4, window_bounds = array<i64: 8, 4, 32>}, {pipeline_mode = #tpu.pipeline_mode<synchronous>, transform_indices = @transform_5, window_bounds = array<i64: 4, 32>}, {pipeline_mode = #tpu.pipeline_mode<synchronous>, transform_indices = @transform_6, window_bounds = array<i64: 4, 32>}]} {
    %c0_i32 = arith.constant 0 : i32
    %0 = arith.cmpi eq, %arg0, %c0_i32 : i32
    %1 = arith.extui %0 : i1 to i32
    %c0_i32_0 = arith.constant 0 : i32
    %2 = arith.cmpi ne, %1, %c0_i32_0 : i32
    scf.if %2 {
      %c0_152 = arith.constant 0 : index
      %c0_153 = arith.constant 0 : index
      %319 = vector.load %arg2[%c0_152, %c0_153] : memref<4x32xf32, #tpu.memory_space<vmem>>, vector<4x32xf32>
      %c0_154 = arith.constant 0 : index
      %c0_155 = arith.constant 0 : index
      %320 = vector.load %arg8[%c0_154, %c0_155] : memref<4x32xf32, #tpu.memory_space<vmem>>, vector<4x32xf32>
      tpu.vector_store %arg8[%c0_154, %c0_155], %319 {strides = array<i32>} : memref<4x32xf32, #tpu.memory_space<vmem>>, vector<4x32xf32>,
      %c0_156 = arith.constant 0 : index
      %c0_157 = arith.constant 0 : index
      %321 = vector.load %arg3[%c0_156, %c0_157] : memref<4x32xf32, #tpu.memory_space<vmem>>, vector<4x32xf32>
      %c0_158 = arith.constant 0 : index
      %c0_159 = arith.constant 0 : index
      %322 = vector.load %arg9[%c0_158, %c0_159] : memref<4x32xf32, #tpu.memory_space<vmem>>, vector<4x32xf32>
      tpu.vector_store %arg9[%c0_158, %c0_159], %321 {strides = array<i32>} : memref<4x32xf32, #tpu.memory_space<vmem>>, vector<4x32xf32>,
    } else {
    }
    %c0_i32_1 = arith.constant 0 : i32
    %3 = arith.index_cast %c0_i32_1 : i32 to index
    %c0 = arith.constant 0 : index
    %c0_2 = arith.constant 0 : index
    %4 = vector.load %arg1[%3, %c0, %c0_2] : memref<8x4x128xf32, #tpu.memory_space<vmem>>, vector<1x4x128xf32>
    %5 = vector.shape_cast %4 : vector<1x4x128xf32> to vector<4x128xf32>
    %c0_3 = arith.constant 0 : index
    %c0_4 = arith.constant 0 : index
    %6 = vector.load %arg8[%c0_3, %c0_4] : memref<4x32xf32, #tpu.memory_space<vmem>>, vector<4x32xf32>
    %c0_5 = arith.constant 0 : index
    %c0_6 = arith.constant 0 : index
    %7 = vector.load %arg4[%c0_5, %c0_6] : memref<32x128xf32, #tpu.memory_space<vmem>>, vector<32x128xf32>
    %cst = arith.constant dense<0.000000e+00> : vector<4x128xf32>
    %8 = tpu.matmul %6, %7, %cst {dimension_numbers = #tpu.dot_dimension_numbers<[1], [0], [0], [1], [0, 0, 1, 1], [], []>} : vector<4x32xf32>, vector<32x128xf32>, vector<4x128xf32> -> vector<4x128xf32>
    %9 = arith.addf %5, %8 : vector<4x128xf32>
    %10 = vector.extract_strided_slice %9 {offsets = [0, 0], sizes = [4, 32], strides = [1, 1]} : vector<4x128xf32> to vector<4x32xf32>
    %11 = arith.negf %10 : vector<4x32xf32>
    %12 = math.exp %11 : vector<4x32xf32>
    %cst_7 = arith.constant 1.000000e+00 : f32
    %13 = vector.broadcast %cst_7 : f32 to vector<4x32xf32>
    %14 = arith.addf %13, %12 : vector<4x32xf32>
    %15 = arith.divf %13, %14 : vector<4x32xf32>
    %16 = vector.extract_strided_slice %9 {offsets = [0, 32], sizes = [4, 32], strides = [1, 1]} : vector<4x128xf32> to vector<4x32xf32>
    %17 = arith.negf %16 : vector<4x32xf32>
    %18 = math.exp %17 : vector<4x32xf32>
    %cst_8 = arith.constant 1.000000e+00 : f32
    %19 = vector.broadcast %cst_8 : f32 to vector<4x32xf32>
    %20 = arith.addf %19, %18 : vector<4x32xf32>
    %21 = arith.divf %19, %20 : vector<4x32xf32>
    %22 = vector.extract_strided_slice %9 {offsets = [0, 64], sizes = [4, 32], strides = [1, 1]} : vector<4x128xf32> to vector<4x32xf32>
    %23 = math.tanh %22 : vector<4x32xf32>
    %24 = vector.extract_strided_slice %9 {offsets = [0, 96], sizes = [4, 32], strides = [1, 1]} : vector<4x128xf32> to vector<4x32xf32>
    %25 = arith.negf %24 : vector<4x32xf32>
    %26 = math.exp %25 : vector<4x32xf32>
    %cst_9 = arith.constant 1.000000e+00 : f32
    %27 = vector.broadcast %cst_9 : f32 to vector<4x32xf32>
    %28 = arith.addf %27, %26 : vector<4x32xf32>
    %29 = arith.divf %27, %28 : vector<4x32xf32>
    %c0_10 = arith.constant 0 : index
    %c0_11 = arith.constant 0 : index
    %30 = vector.load %arg9[%c0_10, %c0_11] : memref<4x32xf32, #tpu.memory_space<vmem>>, vector<4x32xf32>
    %31 = arith.mulf %21, %30 : vector<4x32xf32>
    %32 = arith.mulf %15, %23 : vector<4x32xf32>
    %33 = arith.addf %31, %32 : vector<4x32xf32>
    %34 = math.tanh %33 : vector<4x32xf32>
    %35 = arith.mulf %29, %34 : vector<4x32xf32>
    %c0_12 = arith.constant 0 : index
    %c0_13 = arith.constant 0 : index
    %36 = vector.load %arg9[%c0_12, %c0_13] : memref<4x32xf32, #tpu.memory_space<vmem>>, vector<4x32xf32>
    tpu.vector_store %arg9[%c0_12, %c0_13], %33 {strides = array<i32>} : memref<4x32xf32, #tpu.memory_space<vmem>>, vector<4x32xf32>,
    %c0_14 = arith.constant 0 : index
    %c0_15 = arith.constant 0 : index
    %37 = vector.load %arg8[%c0_14, %c0_15] : memref<4x32xf32, #tpu.memory_space<vmem>>, vector<4x32xf32>
    tpu.vector_store %arg8[%c0_14, %c0_15], %35 {strides = array<i32>} : memref<4x32xf32, #tpu.memory_space<vmem>>, vector<4x32xf32>,
    %38 = arith.index_cast %c0_i32_1 : i32 to index
    %c0_16 = arith.constant 0 : index
    %c0_17 = arith.constant 0 : index
    %39 = vector.load %arg5[%38, %c0_16, %c0_17] : memref<8x4x32xf32, #tpu.memory_space<vmem>>, vector<1x4x32xf32>
    %40 = vector.shape_cast %39 : vector<1x4x32xf32> to vector<4x32xf32>
    %41 = vector.shape_cast %35 : vector<4x32xf32> to vector<1x4x32xf32>
    tpu.vector_store %arg5[%38, %c0_16, %c0_17], %41 {strides = array<i32>} : memref<8x4x32xf32, #tpu.memory_space<vmem>>, vector<1x4x32xf32>,
    %c1_i32 = arith.constant 1 : i32
    %42 = arith.index_cast %c1_i32 : i32 to index
    %c0_18 = arith.constant 0 : index
    %c0_19 = arith.constant 0 : index
    %43 = vector.load %arg1[%42, %c0_18, %c0_19] : memref<8x4x128xf32, #tpu.memory_space<vmem>>, vector<1x4x128xf32>
    %44 = vector.shape_cast %43 : vector<1x4x128xf32> to vector<4x128xf32>
    %c0_20 = arith.constant 0 : index
    %c0_21 = arith.constant 0 : index
    %45 = vector.load %arg8[%c0_20, %c0_21] : memref<4x32xf32, #tpu.memory_space<vmem>>, vector<4x32xf32>
    %c0_22 = arith.constant 0 : index
    %c0_23 = arith.constant 0 : index
    %46 = vector.load %arg4[%c0_22, %c0_23] : memref<32x128xf32, #tpu.memory_space<vmem>>, vector<32x128xf32>
    %cst_24 = arith.constant dense<0.000000e+00> : vector<4x128xf32>
    %47 = tpu.matmul %45, %46, %cst_24 {dimension_numbers = #tpu.dot_dimension_numbers<[1], [0], [0], [1], [0, 0, 1, 1], [], []>} : vector<4x32xf32>, vector<32x128xf32>, vector<4x128xf32> -> vector<4x128xf32>
    %48 = arith.addf %44, %47 : vector<4x128xf32>
    %49 = vector.extract_strided_slice %48 {offsets = [0, 0], sizes = [4, 32], strides = [1, 1]} : vector<4x128xf32> to vector<4x32xf32>
    %50 = arith.negf %49 : vector<4x32xf32>
    %51 = math.exp %50 : vector<4x32xf32>
    %cst_25 = arith.constant 1.000000e+00 : f32
    %52 = vector.broadcast %cst_25 : f32 to vector<4x32xf32>
    %53 = arith.addf %52, %51 : vector<4x32xf32>
    %54 = arith.divf %52, %53 : vector<4x32xf32>
    %55 = vector.extract_strided_slice %48 {offsets = [0, 32], sizes = [4, 32], strides = [1, 1]} : vector<4x128xf32> to vector<4x32xf32>
    %56 = arith.negf %55 : vector<4x32xf32>
    %57 = math.exp %56 : vector<4x32xf32>
    %cst_26 = arith.constant 1.000000e+00 : f32
    %58 = vector.broadcast %cst_26 : f32 to vector<4x32xf32>
    %59 = arith.addf %58, %57 : vector<4x32xf32>
    %60 = arith.divf %58, %59 : vector<4x32xf32>
    %61 = vector.extract_strided_slice %48 {offsets = [0, 64], sizes = [4, 32], strides = [1, 1]} : vector<4x128xf32> to vector<4x32xf32>
    %62 = math.tanh %61 : vector<4x32xf32>
    %63 = vector.extract_strided_slice %48 {offsets = [0, 96], sizes = [4, 32], strides = [1, 1]} : vector<4x128xf32> to vector<4x32xf32>
    %64 = arith.negf %63 : vector<4x32xf32>
    %65 = math.exp %64 : vector<4x32xf32>
    %cst_27 = arith.constant 1.000000e+00 : f32
    %66 = vector.broadcast %cst_27 : f32 to vector<4x32xf32>
    %67 = arith.addf %66, %65 : vector<4x32xf32>
    %68 = arith.divf %66, %67 : vector<4x32xf32>
    %c0_28 = arith.constant 0 : index
    %c0_29 = arith.constant 0 : index
    %69 = vector.load %arg9[%c0_28, %c0_29] : memref<4x32xf32, #tpu.memory_space<vmem>>, vector<4x32xf32>
    %70 = arith.mulf %60, %69 : vector<4x32xf32>
    %71 = arith.mulf %54, %62 : vector<4x32xf32>
    %72 = arith.addf %70, %71 : vector<4x32xf32>
    %73 = math.tanh %72 : vector<4x32xf32>
    %74 = arith.mulf %68, %73 : vector<4x32xf32>
    %c0_30 = arith.constant 0 : index
    %c0_31 = arith.constant 0 : index
    %75 = vector.load %arg9[%c0_30, %c0_31] : memref<4x32xf32, #tpu.memory_space<vmem>>, vector<4x32xf32>
    tpu.vector_store %arg9[%c0_30, %c0_31], %72 {strides = array<i32>} : memref<4x32xf32, #tpu.memory_space<vmem>>, vector<4x32xf32>,
    %c0_32 = arith.constant 0 : index
    %c0_33 = arith.constant 0 : index
    %76 = vector.load %arg8[%c0_32, %c0_33] : memref<4x32xf32, #tpu.memory_space<vmem>>, vector<4x32xf32>
    tpu.vector_store %arg8[%c0_32, %c0_33], %74 {strides = array<i32>} : memref<4x32xf32, #tpu.memory_space<vmem>>, vector<4x32xf32>,
    %77 = arith.index_cast %c1_i32 : i32 to index
    %c0_34 = arith.constant 0 : index
    %c0_35 = arith.constant 0 : index
    %78 = vector.load %arg5[%77, %c0_34, %c0_35] : memref<8x4x32xf32, #tpu.memory_space<vmem>>, vector<1x4x32xf32>
    %79 = vector.shape_cast %78 : vector<1x4x32xf32> to vector<4x32xf32>
    %80 = vector.shape_cast %74 : vector<4x32xf32> to vector<1x4x32xf32>
    tpu.vector_store %arg5[%77, %c0_34, %c0_35], %80 {strides = array<i32>} : memref<8x4x32xf32, #tpu.memory_space<vmem>>, vector<1x4x32xf32>,
    %c2_i32 = arith.constant 2 : i32
    %81 = arith.index_cast %c2_i32 : i32 to index
    %c0_36 = arith.constant 0 : index
    %c0_37 = arith.constant 0 : index
    %82 = vector.load %arg1[%81, %c0_36, %c0_37] : memref<8x4x128xf32, #tpu.memory_space<vmem>>, vector<1x4x128xf32>
    %83 = vector.shape_cast %82 : vector<1x4x128xf32> to vector<4x128xf32>
    %c0_38 = arith.constant 0 : index
    %c0_39 = arith.constant 0 : index
    %84 = vector.load %arg8[%c0_38, %c0_39] : memref<4x32xf32, #tpu.memory_space<vmem>>, vector<4x32xf32>
    %c0_40 = arith.constant 0 : index
    %c0_41 = arith.constant 0 : index
    %85 = vector.load %arg4[%c0_40, %c0_41] : memref<32x128xf32, #tpu.memory_space<vmem>>, vector<32x128xf32>
    %cst_42 = arith.constant dense<0.000000e+00> : vector<4x128xf32>
    %86 = tpu.matmul %84, %85, %cst_42 {dimension_numbers = #tpu.dot_dimension_numbers<[1], [0], [0], [1], [0, 0, 1, 1], [], []>} : vector<4x32xf32>, vector<32x128xf32>, vector<4x128xf32> -> vector<4x128xf32>
    %87 = arith.addf %83, %86 : vector<4x128xf32>
    %88 = vector.extract_strided_slice %87 {offsets = [0, 0], sizes = [4, 32], strides = [1, 1]} : vector<4x128xf32> to vector<4x32xf32>
    %89 = arith.negf %88 : vector<4x32xf32>
    %90 = math.exp %89 : vector<4x32xf32>
    %cst_43 = arith.constant 1.000000e+00 : f32
    %91 = vector.broadcast %cst_43 : f32 to vector<4x32xf32>
    %92 = arith.addf %91, %90 : vector<4x32xf32>
    %93 = arith.divf %91, %92 : vector<4x32xf32>
    %94 = vector.extract_strided_slice %87 {offsets = [0, 32], sizes = [4, 32], strides = [1, 1]} : vector<4x128xf32> to vector<4x32xf32>
    %95 = arith.negf %94 : vector<4x32xf32>
    %96 = math.exp %95 : vector<4x32xf32>
    %cst_44 = arith.constant 1.000000e+00 : f32
    %97 = vector.broadcast %cst_44 : f32 to vector<4x32xf32>
    %98 = arith.addf %97, %96 : vector<4x32xf32>
    %99 = arith.divf %97, %98 : vector<4x32xf32>
    %100 = vector.extract_strided_slice %87 {offsets = [0, 64], sizes = [4, 32], strides = [1, 1]} : vector<4x128xf32> to vector<4x32xf32>
    %101 = math.tanh %100 : vector<4x32xf32>
    %102 = vector.extract_strided_slice %87 {offsets = [0, 96], sizes = [4, 32], strides = [1, 1]} : vector<4x128xf32> to vector<4x32xf32>
    %103 = arith.negf %102 : vector<4x32xf32>
    %104 = math.exp %103 : vector<4x32xf32>
    %cst_45 = arith.constant 1.000000e+00 : f32
    %105 = vector.broadcast %cst_45 : f32 to vector<4x32xf32>
    %106 = arith.addf %105, %104 : vector<4x32xf32>
    %107 = arith.divf %105, %106 : vector<4x32xf32>
    %c0_46 = arith.constant 0 : index
    %c0_47 = arith.constant 0 : index
    %108 = vector.load %arg9[%c0_46, %c0_47] : memref<4x32xf32, #tpu.memory_space<vmem>>, vector<4x32xf32>
    %109 = arith.mulf %99, %108 : vector<4x32xf32>
    %110 = arith.mulf %93, %101 : vector<4x32xf32>
    %111 = arith.addf %109, %110 : vector<4x32xf32>
    %112 = math.tanh %111 : vector<4x32xf32>
    %113 = arith.mulf %107, %112 : vector<4x32xf32>
    %c0_48 = arith.constant 0 : index
    %c0_49 = arith.constant 0 : index
    %114 = vector.load %arg9[%c0_48, %c0_49] : memref<4x32xf32, #tpu.memory_space<vmem>>, vector<4x32xf32>
    tpu.vector_store %arg9[%c0_48, %c0_49], %111 {strides = array<i32>} : memref<4x32xf32, #tpu.memory_space<vmem>>, vector<4x32xf32>,
    %c0_50 = arith.constant 0 : index
    %c0_51 = arith.constant 0 : index
    %115 = vector.load %arg8[%c0_50, %c0_51] : memref<4x32xf32, #tpu.memory_space<vmem>>, vector<4x32xf32>
    tpu.vector_store %arg8[%c0_50, %c0_51], %113 {strides = array<i32>} : memref<4x32xf32, #tpu.memory_space<vmem>>, vector<4x32xf32>,
    %116 = arith.index_cast %c2_i32 : i32 to index
    %c0_52 = arith.constant 0 : index
    %c0_53 = arith.constant 0 : index
    %117 = vector.load %arg5[%116, %c0_52, %c0_53] : memref<8x4x32xf32, #tpu.memory_space<vmem>>, vector<1x4x32xf32>
    %118 = vector.shape_cast %117 : vector<1x4x32xf32> to vector<4x32xf32>
    %119 = vector.shape_cast %113 : vector<4x32xf32> to vector<1x4x32xf32>
    tpu.vector_store %arg5[%116, %c0_52, %c0_53], %119 {strides = array<i32>} : memref<8x4x32xf32, #tpu.memory_space<vmem>>, vector<1x4x32xf32>,
    %c3_i32 = arith.constant 3 : i32
    %120 = arith.index_cast %c3_i32 : i32 to index
    %c0_54 = arith.constant 0 : index
    %c0_55 = arith.constant 0 : index
    %121 = vector.load %arg1[%120, %c0_54, %c0_55] : memref<8x4x128xf32, #tpu.memory_space<vmem>>, vector<1x4x128xf32>
    %122 = vector.shape_cast %121 : vector<1x4x128xf32> to vector<4x128xf32>
    %c0_56 = arith.constant 0 : index
    %c0_57 = arith.constant 0 : index
    %123 = vector.load %arg8[%c0_56, %c0_57] : memref<4x32xf32, #tpu.memory_space<vmem>>, vector<4x32xf32>
    %c0_58 = arith.constant 0 : index
    %c0_59 = arith.constant 0 : index
    %124 = vector.load %arg4[%c0_58, %c0_59] : memref<32x128xf32, #tpu.memory_space<vmem>>, vector<32x128xf32>
    %cst_60 = arith.constant dense<0.000000e+00> : vector<4x128xf32>
    %125 = tpu.matmul %123, %124, %cst_60 {dimension_numbers = #tpu.dot_dimension_numbers<[1], [0], [0], [1], [0, 0, 1, 1], [], []>} : vector<4x32xf32>, vector<32x128xf32>, vector<4x128xf32> -> vector<4x128xf32>
    %126 = arith.addf %122, %125 : vector<4x128xf32>
    %127 = vector.extract_strided_slice %126 {offsets = [0, 0], sizes = [4, 32], strides = [1, 1]} : vector<4x128xf32> to vector<4x32xf32>
    %128 = arith.negf %127 : vector<4x32xf32>
    %129 = math.exp %128 : vector<4x32xf32>
    %cst_61 = arith.constant 1.000000e+00 : f32
    %130 = vector.broadcast %cst_61 : f32 to vector<4x32xf32>
    %131 = arith.addf %130, %129 : vector<4x32xf32>
    %132 = arith.divf %130, %131 : vector<4x32xf32>
    %133 = vector.extract_strided_slice %126 {offsets = [0, 32], sizes = [4, 32], strides = [1, 1]} : vector<4x128xf32> to vector<4x32xf32>
    %134 = arith.negf %133 : vector<4x32xf32>
    %135 = math.exp %134 : vector<4x32xf32>
    %cst_62 = arith.constant 1.000000e+00 : f32
    %136 = vector.broadcast %cst_62 : f32 to vector<4x32xf32>
    %137 = arith.addf %136, %135 : vector<4x32xf32>
    %138 = arith.divf %136, %137 : vector<4x32xf32>
    %139 = vector.extract_strided_slice %126 {offsets = [0, 64], sizes = [4, 32], strides = [1, 1]} : vector<4x128xf32> to vector<4x32xf32>
    %140 = math.tanh %139 : vector<4x32xf32>
    %141 = vector.extract_strided_slice %126 {offsets = [0, 96], sizes = [4, 32], strides = [1, 1]} : vector<4x128xf32> to vector<4x32xf32>
    %142 = arith.negf %141 : vector<4x32xf32>
    %143 = math.exp %142 : vector<4x32xf32>
    %cst_63 = arith.constant 1.000000e+00 : f32
    %144 = vector.broadcast %cst_63 : f32 to vector<4x32xf32>
    %145 = arith.addf %144, %143 : vector<4x32xf32>
    %146 = arith.divf %144, %145 : vector<4x32xf32>
    %c0_64 = arith.constant 0 : index
    %c0_65 = arith.constant 0 : index
    %147 = vector.load %arg9[%c0_64, %c0_65] : memref<4x32xf32, #tpu.memory_space<vmem>>, vector<4x32xf32>
    %148 = arith.mulf %138, %147 : vector<4x32xf32>
    %149 = arith.mulf %132, %140 : vector<4x32xf32>
    %150 = arith.addf %148, %149 : vector<4x32xf32>
    %151 = math.tanh %150 : vector<4x32xf32>
    %152 = arith.mulf %146, %151 : vector<4x32xf32>
    %c0_66 = arith.constant 0 : index
    %c0_67 = arith.constant 0 : index
    %153 = vector.load %arg9[%c0_66, %c0_67] : memref<4x32xf32, #tpu.memory_space<vmem>>, vector<4x32xf32>
    tpu.vector_store %arg9[%c0_66, %c0_67], %150 {strides = array<i32>} : memref<4x32xf32, #tpu.memory_space<vmem>>, vector<4x32xf32>,
    %c0_68 = arith.constant 0 : index
    %c0_69 = arith.constant 0 : index
    %154 = vector.load %arg8[%c0_68, %c0_69] : memref<4x32xf32, #tpu.memory_space<vmem>>, vector<4x32xf32>
    tpu.vector_store %arg8[%c0_68, %c0_69], %152 {strides = array<i32>} : memref<4x32xf32, #tpu.memory_space<vmem>>, vector<4x32xf32>,
    %155 = arith.index_cast %c3_i32 : i32 to index
    %c0_70 = arith.constant 0 : index
    %c0_71 = arith.constant 0 : index
    %156 = vector.load %arg5[%155, %c0_70, %c0_71] : memref<8x4x32xf32, #tpu.memory_space<vmem>>, vector<1x4x32xf32>
    %157 = vector.shape_cast %156 : vector<1x4x32xf32> to vector<4x32xf32>
    %158 = vector.shape_cast %152 : vector<4x32xf32> to vector<1x4x32xf32>
    tpu.vector_store %arg5[%155, %c0_70, %c0_71], %158 {strides = array<i32>} : memref<8x4x32xf32, #tpu.memory_space<vmem>>, vector<1x4x32xf32>,
    %c4_i32 = arith.constant 4 : i32
    %159 = arith.index_cast %c4_i32 : i32 to index
    %c0_72 = arith.constant 0 : index
    %c0_73 = arith.constant 0 : index
    %160 = vector.load %arg1[%159, %c0_72, %c0_73] : memref<8x4x128xf32, #tpu.memory_space<vmem>>, vector<1x4x128xf32>
    %161 = vector.shape_cast %160 : vector<1x4x128xf32> to vector<4x128xf32>
    %c0_74 = arith.constant 0 : index
    %c0_75 = arith.constant 0 : index
    %162 = vector.load %arg8[%c0_74, %c0_75] : memref<4x32xf32, #tpu.memory_space<vmem>>, vector<4x32xf32>
    %c0_76 = arith.constant 0 : index
    %c0_77 = arith.constant 0 : index
    %163 = vector.load %arg4[%c0_76, %c0_77] : memref<32x128xf32, #tpu.memory_space<vmem>>, vector<32x128xf32>
    %cst_78 = arith.constant dense<0.000000e+00> : vector<4x128xf32>
    %164 = tpu.matmul %162, %163, %cst_78 {dimension_numbers = #tpu.dot_dimension_numbers<[1], [0], [0], [1], [0, 0, 1, 1], [], []>} : vector<4x32xf32>, vector<32x128xf32>, vector<4x128xf32> -> vector<4x128xf32>
    %165 = arith.addf %161, %164 : vector<4x128xf32>
    %166 = vector.extract_strided_slice %165 {offsets = [0, 0], sizes = [4, 32], strides = [1, 1]} : vector<4x128xf32> to vector<4x32xf32>
    %167 = arith.negf %166 : vector<4x32xf32>
    %168 = math.exp %167 : vector<4x32xf32>
    %cst_79 = arith.constant 1.000000e+00 : f32
    %169 = vector.broadcast %cst_79 : f32 to vector<4x32xf32>
    %170 = arith.addf %169, %168 : vector<4x32xf32>
    %171 = arith.divf %169, %170 : vector<4x32xf32>
    %172 = vector.extract_strided_slice %165 {offsets = [0, 32], sizes = [4, 32], strides = [1, 1]} : vector<4x128xf32> to vector<4x32xf32>
    %173 = arith.negf %172 : vector<4x32xf32>
    %174 = math.exp %173 : vector<4x32xf32>
    %cst_80 = arith.constant 1.000000e+00 : f32
    %175 = vector.broadcast %cst_80 : f32 to vector<4x32xf32>
    %176 = arith.addf %175, %174 : vector<4x32xf32>
    %177 = arith.divf %175, %176 : vector<4x32xf32>
    %178 = vector.extract_strided_slice %165 {offsets = [0, 64], sizes = [4, 32], strides = [1, 1]} : vector<4x128xf32> to vector<4x32xf32>
    %179 = math.tanh %178 : vector<4x32xf32>
    %180 = vector.extract_strided_slice %165 {offsets = [0, 96], sizes = [4, 32], strides = [1, 1]} : vector<4x128xf32> to vector<4x32xf32>
    %181 = arith.negf %180 : vector<4x32xf32>
    %182 = math.exp %181 : vector<4x32xf32>
    %cst_81 = arith.constant 1.000000e+00 : f32
    %183 = vector.broadcast %cst_81 : f32 to vector<4x32xf32>
    %184 = arith.addf %183, %182 : vector<4x32xf32>
    %185 = arith.divf %183, %184 : vector<4x32xf32>
    %c0_82 = arith.constant 0 : index
    %c0_83 = arith.constant 0 : index
    %186 = vector.load %arg9[%c0_82, %c0_83] : memref<4x32xf32, #tpu.memory_space<vmem>>, vector<4x32xf32>
    %187 = arith.mulf %177, %186 : vector<4x32xf32>
    %188 = arith.mulf %171, %179 : vector<4x32xf32>
    %189 = arith.addf %187, %188 : vector<4x32xf32>
    %190 = math.tanh %189 : vector<4x32xf32>
    %191 = arith.mulf %185, %190 : vector<4x32xf32>
    %c0_84 = arith.constant 0 : index
    %c0_85 = arith.constant 0 : index
    %192 = vector.load %arg9[%c0_84, %c0_85] : memref<4x32xf32, #tpu.memory_space<vmem>>, vector<4x32xf32>
    tpu.vector_store %arg9[%c0_84, %c0_85], %189 {strides = array<i32>} : memref<4x32xf32, #tpu.memory_space<vmem>>, vector<4x32xf32>,
    %c0_86 = arith.constant 0 : index
    %c0_87 = arith.constant 0 : index
    %193 = vector.load %arg8[%c0_86, %c0_87] : memref<4x32xf32, #tpu.memory_space<vmem>>, vector<4x32xf32>
    tpu.vector_store %arg8[%c0_86, %c0_87], %191 {strides = array<i32>} : memref<4x32xf32, #tpu.memory_space<vmem>>, vector<4x32xf32>,
    %194 = arith.index_cast %c4_i32 : i32 to index
    %c0_88 = arith.constant 0 : index
    %c0_89 = arith.constant 0 : index
    %195 = vector.load %arg5[%194, %c0_88, %c0_89] : memref<8x4x32xf32, #tpu.memory_space<vmem>>, vector<1x4x32xf32>
    %196 = vector.shape_cast %195 : vector<1x4x32xf32> to vector<4x32xf32>
    %197 = vector.shape_cast %191 : vector<4x32xf32> to vector<1x4x32xf32>
    tpu.vector_store %arg5[%194, %c0_88, %c0_89], %197 {strides = array<i32>} : memref<8x4x32xf32, #tpu.memory_space<vmem>>, vector<1x4x32xf32>,
    %c5_i32 = arith.constant 5 : i32
    %198 = arith.index_cast %c5_i32 : i32 to index
    %c0_90 = arith.constant 0 : index
    %c0_91 = arith.constant 0 : index
    %199 = vector.load %arg1[%198, %c0_90, %c0_91] : memref<8x4x128xf32, #tpu.memory_space<vmem>>, vector<1x4x128xf32>
    %200 = vector.shape_cast %199 : vector<1x4x128xf32> to vector<4x128xf32>
    %c0_92 = arith.constant 0 : index
    %c0_93 = arith.constant 0 : index
    %201 = vector.load %arg8[%c0_92, %c0_93] : memref<4x32xf32, #tpu.memory_space<vmem>>, vector<4x32xf32>
    %c0_94 = arith.constant 0 : index
    %c0_95 = arith.constant 0 : index
    %202 = vector.load %arg4[%c0_94, %c0_95] : memref<32x128xf32, #tpu.memory_space<vmem>>, vector<32x128xf32>
    %cst_96 = arith.constant dense<0.000000e+00> : vector<4x128xf32>
    %203 = tpu.matmul %201, %202, %cst_96 {dimension_numbers = #tpu.dot_dimension_numbers<[1], [0], [0], [1], [0, 0, 1, 1], [], []>} : vector<4x32xf32>, vector<32x128xf32>, vector<4x128xf32> -> vector<4x128xf32>
    %204 = arith.addf %200, %203 : vector<4x128xf32>
    %205 = vector.extract_strided_slice %204 {offsets = [0, 0], sizes = [4, 32], strides = [1, 1]} : vector<4x128xf32> to vector<4x32xf32>
    %206 = arith.negf %205 : vector<4x32xf32>
    %207 = math.exp %206 : vector<4x32xf32>
    %cst_97 = arith.constant 1.000000e+00 : f32
    %208 = vector.broadcast %cst_97 : f32 to vector<4x32xf32>
    %209 = arith.addf %208, %207 : vector<4x32xf32>
    %210 = arith.divf %208, %209 : vector<4x32xf32>
    %211 = vector.extract_strided_slice %204 {offsets = [0, 32], sizes = [4, 32], strides = [1, 1]} : vector<4x128xf32> to vector<4x32xf32>
    %212 = arith.negf %211 : vector<4x32xf32>
    %213 = math.exp %212 : vector<4x32xf32>
    %cst_98 = arith.constant 1.000000e+00 : f32
    %214 = vector.broadcast %cst_98 : f32 to vector<4x32xf32>
    %215 = arith.addf %214, %213 : vector<4x32xf32>
    %216 = arith.divf %214, %215 : vector<4x32xf32>
    %217 = vector.extract_strided_slice %204 {offsets = [0, 64], sizes = [4, 32], strides = [1, 1]} : vector<4x128xf32> to vector<4x32xf32>
    %218 = math.tanh %217 : vector<4x32xf32>
    %219 = vector.extract_strided_slice %204 {offsets = [0, 96], sizes = [4, 32], strides = [1, 1]} : vector<4x128xf32> to vector<4x32xf32>
    %220 = arith.negf %219 : vector<4x32xf32>
    %221 = math.exp %220 : vector<4x32xf32>
    %cst_99 = arith.constant 1.000000e+00 : f32
    %222 = vector.broadcast %cst_99 : f32 to vector<4x32xf32>
    %223 = arith.addf %222, %221 : vector<4x32xf32>
    %224 = arith.divf %222, %223 : vector<4x32xf32>
    %c0_100 = arith.constant 0 : index
    %c0_101 = arith.constant 0 : index
    %225 = vector.load %arg9[%c0_100, %c0_101] : memref<4x32xf32, #tpu.memory_space<vmem>>, vector<4x32xf32>
    %226 = arith.mulf %216, %225 : vector<4x32xf32>
    %227 = arith.mulf %210, %218 : vector<4x32xf32>
    %228 = arith.addf %226, %227 : vector<4x32xf32>
    %229 = math.tanh %228 : vector<4x32xf32>
    %230 = arith.mulf %224, %229 : vector<4x32xf32>
    %c0_102 = arith.constant 0 : index
    %c0_103 = arith.constant 0 : index
    %231 = vector.load %arg9[%c0_102, %c0_103] : memref<4x32xf32, #tpu.memory_space<vmem>>, vector<4x32xf32>
    tpu.vector_store %arg9[%c0_102, %c0_103], %228 {strides = array<i32>} : memref<4x32xf32, #tpu.memory_space<vmem>>, vector<4x32xf32>,
    %c0_104 = arith.constant 0 : index
    %c0_105 = arith.constant 0 : index
    %232 = vector.load %arg8[%c0_104, %c0_105] : memref<4x32xf32, #tpu.memory_space<vmem>>, vector<4x32xf32>
    tpu.vector_store %arg8[%c0_104, %c0_105], %230 {strides = array<i32>} : memref<4x32xf32, #tpu.memory_space<vmem>>, vector<4x32xf32>,
    %233 = arith.index_cast %c5_i32 : i32 to index
    %c0_106 = arith.constant 0 : index
    %c0_107 = arith.constant 0 : index
    %234 = vector.load %arg5[%233, %c0_106, %c0_107] : memref<8x4x32xf32, #tpu.memory_space<vmem>>, vector<1x4x32xf32>
    %235 = vector.shape_cast %234 : vector<1x4x32xf32> to vector<4x32xf32>
    %236 = vector.shape_cast %230 : vector<4x32xf32> to vector<1x4x32xf32>
    tpu.vector_store %arg5[%233, %c0_106, %c0_107], %236 {strides = array<i32>} : memref<8x4x32xf32, #tpu.memory_space<vmem>>, vector<1x4x32xf32>,
    %c6_i32 = arith.constant 6 : i32
    %237 = arith.index_cast %c6_i32 : i32 to index
    %c0_108 = arith.constant 0 : index
    %c0_109 = arith.constant 0 : index
    %238 = vector.load %arg1[%237, %c0_108, %c0_109] : memref<8x4x128xf32, #tpu.memory_space<vmem>>, vector<1x4x128xf32>
    %239 = vector.shape_cast %238 : vector<1x4x128xf32> to vector<4x128xf32>
    %c0_110 = arith.constant 0 : index
    %c0_111 = arith.constant 0 : index
    %240 = vector.load %arg8[%c0_110, %c0_111] : memref<4x32xf32, #tpu.memory_space<vmem>>, vector<4x32xf32>
    %c0_112 = arith.constant 0 : index
    %c0_113 = arith.constant 0 : index
    %241 = vector.load %arg4[%c0_112, %c0_113] : memref<32x128xf32, #tpu.memory_space<vmem>>, vector<32x128xf32>
    %cst_114 = arith.constant dense<0.000000e+00> : vector<4x128xf32>
    %242 = tpu.matmul %240, %241, %cst_114 {dimension_numbers = #tpu.dot_dimension_numbers<[1], [0], [0], [1], [0, 0, 1, 1], [], []>} : vector<4x32xf32>, vector<32x128xf32>, vector<4x128xf32> -> vector<4x128xf32>
    %243 = arith.addf %239, %242 : vector<4x128xf32>
    %244 = vector.extract_strided_slice %243 {offsets = [0, 0], sizes = [4, 32], strides = [1, 1]} : vector<4x128xf32> to vector<4x32xf32>
    %245 = arith.negf %244 : vector<4x32xf32>
    %246 = math.exp %245 : vector<4x32xf32>
    %cst_115 = arith.constant 1.000000e+00 : f32
    %247 = vector.broadcast %cst_115 : f32 to vector<4x32xf32>
    %248 = arith.addf %247, %246 : vector<4x32xf32>
    %249 = arith.divf %247, %248 : vector<4x32xf32>
    %250 = vector.extract_strided_slice %243 {offsets = [0, 32], sizes = [4, 32], strides = [1, 1]} : vector<4x128xf32> to vector<4x32xf32>
    %251 = arith.negf %250 : vector<4x32xf32>
    %252 = math.exp %251 : vector<4x32xf32>
    %cst_116 = arith.constant 1.000000e+00 : f32
    %253 = vector.broadcast %cst_116 : f32 to vector<4x32xf32>
    %254 = arith.addf %253, %252 : vector<4x32xf32>
    %255 = arith.divf %253, %254 : vector<4x32xf32>
    %256 = vector.extract_strided_slice %243 {offsets = [0, 64], sizes = [4, 32], strides = [1, 1]} : vector<4x128xf32> to vector<4x32xf32>
    %257 = math.tanh %256 : vector<4x32xf32>
    %258 = vector.extract_strided_slice %243 {offsets = [0, 96], sizes = [4, 32], strides = [1, 1]} : vector<4x128xf32> to vector<4x32xf32>
    %259 = arith.negf %258 : vector<4x32xf32>
    %260 = math.exp %259 : vector<4x32xf32>
    %cst_117 = arith.constant 1.000000e+00 : f32
    %261 = vector.broadcast %cst_117 : f32 to vector<4x32xf32>
    %262 = arith.addf %261, %260 : vector<4x32xf32>
    %263 = arith.divf %261, %262 : vector<4x32xf32>
    %c0_118 = arith.constant 0 : index
    %c0_119 = arith.constant 0 : index
    %264 = vector.load %arg9[%c0_118, %c0_119] : memref<4x32xf32, #tpu.memory_space<vmem>>, vector<4x32xf32>
    %265 = arith.mulf %255, %264 : vector<4x32xf32>
    %266 = arith.mulf %249, %257 : vector<4x32xf32>
    %267 = arith.addf %265, %266 : vector<4x32xf32>
    %268 = math.tanh %267 : vector<4x32xf32>
    %269 = arith.mulf %263, %268 : vector<4x32xf32>
    %c0_120 = arith.constant 0 : index
    %c0_121 = arith.constant 0 : index
    %270 = vector.load %arg9[%c0_120, %c0_121] : memref<4x32xf32, #tpu.memory_space<vmem>>, vector<4x32xf32>
    tpu.vector_store %arg9[%c0_120, %c0_121], %267 {strides = array<i32>} : memref<4x32xf32, #tpu.memory_space<vmem>>, vector<4x32xf32>,
    %c0_122 = arith.constant 0 : index
    %c0_123 = arith.constant 0 : index
    %271 = vector.load %arg8[%c0_122, %c0_123] : memref<4x32xf32, #tpu.memory_space<vmem>>, vector<4x32xf32>
    tpu.vector_store %arg8[%c0_122, %c0_123], %269 {strides = array<i32>} : memref<4x32xf32, #tpu.memory_space<vmem>>, vector<4x32xf32>,
    %272 = arith.index_cast %c6_i32 : i32 to index
    %c0_124 = arith.constant 0 : index
    %c0_125 = arith.constant 0 : index
    %273 = vector.load %arg5[%272, %c0_124, %c0_125] : memref<8x4x32xf32, #tpu.memory_space<vmem>>, vector<1x4x32xf32>
    %274 = vector.shape_cast %273 : vector<1x4x32xf32> to vector<4x32xf32>
    %275 = vector.shape_cast %269 : vector<4x32xf32> to vector<1x4x32xf32>
    tpu.vector_store %arg5[%272, %c0_124, %c0_125], %275 {strides = array<i32>} : memref<8x4x32xf32, #tpu.memory_space<vmem>>, vector<1x4x32xf32>,
    %c7_i32 = arith.constant 7 : i32
    %276 = arith.index_cast %c7_i32 : i32 to index
    %c0_126 = arith.constant 0 : index
    %c0_127 = arith.constant 0 : index
    %277 = vector.load %arg1[%276, %c0_126, %c0_127] : memref<8x4x128xf32, #tpu.memory_space<vmem>>, vector<1x4x128xf32>
    %278 = vector.shape_cast %277 : vector<1x4x128xf32> to vector<4x128xf32>
    %c0_128 = arith.constant 0 : index
    %c0_129 = arith.constant 0 : index
    %279 = vector.load %arg8[%c0_128, %c0_129] : memref<4x32xf32, #tpu.memory_space<vmem>>, vector<4x32xf32>
    %c0_130 = arith.constant 0 : index
    %c0_131 = arith.constant 0 : index
    %280 = vector.load %arg4[%c0_130, %c0_131] : memref<32x128xf32, #tpu.memory_space<vmem>>, vector<32x128xf32>
    %cst_132 = arith.constant dense<0.000000e+00> : vector<4x128xf32>
    %281 = tpu.matmul %279, %280, %cst_132 {dimension_numbers = #tpu.dot_dimension_numbers<[1], [0], [0], [1], [0, 0, 1, 1], [], []>} : vector<4x32xf32>, vector<32x128xf32>, vector<4x128xf32> -> vector<4x128xf32>
    %282 = arith.addf %278, %281 : vector<4x128xf32>
    %283 = vector.extract_strided_slice %282 {offsets = [0, 0], sizes = [4, 32], strides = [1, 1]} : vector<4x128xf32> to vector<4x32xf32>
    %284 = arith.negf %283 : vector<4x32xf32>
    %285 = math.exp %284 : vector<4x32xf32>
    %cst_133 = arith.constant 1.000000e+00 : f32
    %286 = vector.broadcast %cst_133 : f32 to vector<4x32xf32>
    %287 = arith.addf %286, %285 : vector<4x32xf32>
    %288 = arith.divf %286, %287 : vector<4x32xf32>
    %289 = vector.extract_strided_slice %282 {offsets = [0, 32], sizes = [4, 32], strides = [1, 1]} : vector<4x128xf32> to vector<4x32xf32>
    %290 = arith.negf %289 : vector<4x32xf32>
    %291 = math.exp %290 : vector<4x32xf32>
    %cst_134 = arith.constant 1.000000e+00 : f32
    %292 = vector.broadcast %cst_134 : f32 to vector<4x32xf32>
    %293 = arith.addf %292, %291 : vector<4x32xf32>
    %294 = arith.divf %292, %293 : vector<4x32xf32>
    %295 = vector.extract_strided_slice %282 {offsets = [0, 64], sizes = [4, 32], strides = [1, 1]} : vector<4x128xf32> to vector<4x32xf32>
    %296 = math.tanh %295 : vector<4x32xf32>
    %297 = vector.extract_strided_slice %282 {offsets = [0, 96], sizes = [4, 32], strides = [1, 1]} : vector<4x128xf32> to vector<4x32xf32>
    %298 = arith.negf %297 : vector<4x32xf32>
    %299 = math.exp %298 : vector<4x32xf32>
    %cst_135 = arith.constant 1.000000e+00 : f32
    %300 = vector.broadcast %cst_135 : f32 to vector<4x32xf32>
    %301 = arith.addf %300, %299 : vector<4x32xf32>
    %302 = arith.divf %300, %301 : vector<4x32xf32>
    %c0_136 = arith.constant 0 : index
    %c0_137 = arith.constant 0 : index
    %303 = vector.load %arg9[%c0_136, %c0_137] : memref<4x32xf32, #tpu.memory_space<vmem>>, vector<4x32xf32>
    %304 = arith.mulf %294, %303 : vector<4x32xf32>
    %305 = arith.mulf %288, %296 : vector<4x32xf32>
    %306 = arith.addf %304, %305 : vector<4x32xf32>
    %307 = math.tanh %306 : vector<4x32xf32>
    %308 = arith.mulf %302, %307 : vector<4x32xf32>
    %c0_138 = arith.constant 0 : index
    %c0_139 = arith.constant 0 : index
    %309 = vector.load %arg9[%c0_138, %c0_139] : memref<4x32xf32, #tpu.memory_space<vmem>>, vector<4x32xf32>
    tpu.vector_store %arg9[%c0_138, %c0_139], %306 {strides = array<i32>} : memref<4x32xf32, #tpu.memory_space<vmem>>, vector<4x32xf32>,
    %c0_140 = arith.constant 0 : index
    %c0_141 = arith.constant 0 : index
    %310 = vector.load %arg8[%c0_140, %c0_141] : memref<4x32xf32, #tpu.memory_space<vmem>>, vector<4x32xf32>
    tpu.vector_store %arg8[%c0_140, %c0_141], %308 {strides = array<i32>} : memref<4x32xf32, #tpu.memory_space<vmem>>, vector<4x32xf32>,
    %311 = arith.index_cast %c7_i32 : i32 to index
    %c0_142 = arith.constant 0 : index
    %c0_143 = arith.constant 0 : index
    %312 = vector.load %arg5[%311, %c0_142, %c0_143] : memref<8x4x32xf32, #tpu.memory_space<vmem>>, vector<1x4x32xf32>
    %313 = vector.shape_cast %312 : vector<1x4x32xf32> to vector<4x32xf32>
    %314 = vector.shape_cast %308 : vector<4x32xf32> to vector<1x4x32xf32>
    tpu.vector_store %arg5[%311, %c0_142, %c0_143], %314 {strides = array<i32>} : memref<8x4x32xf32, #tpu.memory_space<vmem>>, vector<1x4x32xf32>,
    %c8_i32 = arith.constant 8 : i32
    %c0_144 = arith.constant 0 : index
    %c0_145 = arith.constant 0 : index
    %315 = vector.load %arg8[%c0_144, %c0_145] : memref<4x32xf32, #tpu.memory_space<vmem>>, vector<4x32xf32>
    %c0_146 = arith.constant 0 : index
    %c0_147 = arith.constant 0 : index
    %316 = vector.load %arg6[%c0_146, %c0_147] : memref<4x32xf32, #tpu.memory_space<vmem>>, vector<4x32xf32>
    tpu.vector_store %arg6[%c0_146, %c0_147], %315 {strides = array<i32>} : memref<4x32xf32, #tpu.memory_space<vmem>>, vector<4x32xf32>,
    %c0_148 = arith.constant 0 : index
    %c0_149 = arith.constant 0 : index
    %317 = vector.load %arg9[%c0_148, %c0_149] : memref<4x32xf32, #tpu.memory_space<vmem>>, vector<4x32xf32>
    %c0_150 = arith.constant 0 : index
    %c0_151 = arith.constant 0 : index
    %318 = vector.load %arg7[%c0_150, %c0_151] : memref<4x32xf32, #tpu.memory_space<vmem>>, vector<4x32xf32>
    tpu.vector_store %arg7[%c0_150, %c0_151], %317 {strides = array<i32>} : memref<4x32xf32, #tpu.memory_space<vmem>>, vector<4x32xf32>,
    return
  }
  func.func @transform_0(%arg0: i32) -> (i32, i32, i32) {
    %c0_i32 = arith.constant 0 : i32
    %c0_i32_0 = arith.constant 0 : i32
    %c0_i32_1 = arith.constant 0 : i32
    return %arg0, %c0_i32, %c0_i32_0 : i32, i32, i32
  }
  func.func @transform_1(%arg0: i32) -> (i32, i32) {
    %c0_i32 = arith.constant 0 : i32
    %c0_i32_0 = arith.constant 0 : i32
    %c0_i32_1 = arith.constant 0 : i32
    return %c0_i32, %c0_i32_0 : i32, i32
  }
  func.func @transform_2(%arg0: i32) -> (i32, i32) {
    %c0_i32 = arith.constant 0 : i32
    %c0_i32_0 = arith.constant 0 : i32
    %c0_i32_1 = arith.constant 0 : i32
    return %c0_i32, %c0_i32_0 : i32, i32
  }
  func.func @transform_3(%arg0: i32) -> (i32, i32) {
    %c0_i32 = arith.constant 0 : i32
    %c0_i32_0 = arith.constant 0 : i32
    %c0_i32_1 = arith.constant 0 : i32
    return %c0_i32, %c0_i32_0 : i32, i32
  }
  func.func @transform_4(%arg0: i32) -> (i32, i32, i32) {
    %c0_i32 = arith.constant 0 : i32
    %c0_i32_0 = arith.constant 0 : i32
    %c0_i32_1 = arith.constant 0 : i32
    return %arg0, %c0_i32, %c0_i32_0 : i32, i32, i32
  }
  func.func @transform_5(%arg0: i32) -> (i32, i32) {
    %c0_i32 = arith.constant 0 : i32
    %c0_i32_0 = arith.constant 0 : i32
    %c0_i32_1 = arith.constant 0 : i32
    return %c0_i32, %c0_i32_0 : i32, i32
  }
  func.func @transform_6(%arg0: i32) -> (i32, i32) {
    %c0_i32 = arith.constant 0 : i32
    %c0_i32_0 = arith.constant 0 : i32
    %c0_i32_1 = arith.constant 0 : i32
    return %c0_i32, %c0_i32_0 : i32, i32
  }
}

module attributes {stable_mosaic.version = 11 : i64} {
  func.func @linear_kernel(%arg0: i32, %arg1: i32, %arg2: memref<32x16xf32, #tpu.memory_space<vmem>>, %arg3: memref<16x128xf32, #tpu.memory_space<vmem>>, %arg4: memref<1x128xf32, #tpu.memory_space<vmem>>, %arg5: memref<32x128xf32, #tpu.memory_space<vmem>>) attributes {dimension_semantics = [#tpu.dimension_semantics<parallel>, #tpu.dimension_semantics<parallel>], iteration_bounds = array<i64: 1, 1>, scalar_prefetch = 0 : i64, scratch_operands = 0 : i64, tpu.core_type = #tpu.core_type<tc>, window_params = [{transform_indices = @transform_0, window_bounds = array<i64: 32, 16>}, {transform_indices = @transform_1, window_bounds = array<i64: 16, 128>}, {transform_indices = @transform_2, window_bounds = array<i64: 1, 128>}, {transform_indices = @transform_3, window_bounds = array<i64: 32, 128>}]} {
    %c0 = arith.constant 0 : index
    %c0_0 = arith.constant 0 : index
    %0 = vector.load %arg2[%c0, %c0_0] : memref<32x16xf32, #tpu.memory_space<vmem>>, vector<32x16xf32>
    %c0_1 = arith.constant 0 : index
    %c0_2 = arith.constant 0 : index
    %1 = vector.load %arg3[%c0_1, %c0_2] : memref<16x128xf32, #tpu.memory_space<vmem>>, vector<16x128xf32>
    %cst = arith.constant dense<0.000000e+00> : vector<32x128xf32>
    %2 = tpu.matmul %0, %1, %cst {dimension_numbers = #tpu.dot_dimension_numbers<[1], [0], [0], [1], [0, 0, 1, 1], [], []>} : vector<32x16xf32>, vector<16x128xf32>, vector<32x128xf32> -> vector<32x128xf32>
    %c0_3 = arith.constant 0 : index
    %c0_4 = arith.constant 0 : index
    %3 = vector.load %arg4[%c0_3, %c0_4] : memref<1x128xf32, #tpu.memory_space<vmem>>, vector<1x128xf32>
    %4 = vector.broadcast %3 : vector<1x128xf32> to vector<32x128xf32>
    %5 = arith.addf %2, %4 : vector<32x128xf32>
    %c0_5 = arith.constant 0 : index
    %c0_6 = arith.constant 0 : index
    %6 = vector.load %arg5[%c0_5, %c0_6] : memref<32x128xf32, #tpu.memory_space<vmem>>, vector<32x128xf32>
    tpu.vector_store %arg5[%c0_5, %c0_6], %5 {strides = array<i32>} : memref<32x128xf32, #tpu.memory_space<vmem>>, vector<32x128xf32>,
    return
  }
  func.func @transform_0(%arg0: i32, %arg1: i32) -> (i32, i32) {
    %c0_i32 = arith.constant 0 : i32
    %c0_i32_0 = arith.constant 0 : i32
    return %arg0, %c0_i32 : i32, i32
  }
  func.func @transform_1(%arg0: i32, %arg1: i32) -> (i32, i32) {
    %c0_i32 = arith.constant 0 : i32
    %c0_i32_0 = arith.constant 0 : i32
    return %c0_i32, %arg1 : i32, i32
  }
  func.func @transform_2(%arg0: i32, %arg1: i32) -> (i32, i32) {
    %c0_i32 = arith.constant 0 : i32
    %c0_i32_0 = arith.constant 0 : i32
    return %c0_i32, %arg1 : i32, i32
  }
  func.func @transform_3(%arg0: i32, %arg1: i32) -> (i32, i32) {
    %c0_i32 = arith.constant 0 : i32
    return %arg0, %arg1 : i32, i32
  }
}

module attributes {stable_mosaic.version = 11 : i64} {
  func.func @linear_kernel(%arg0: i32, %arg1: i32, %arg2: memref<32x32xf32, #tpu.memory_space<vmem>>, %arg3: memref<32x128xf32, #tpu.memory_space<vmem>>, %arg4: memref<1x128xf32, #tpu.memory_space<vmem>>, %arg5: memref<32x128xf32, #tpu.memory_space<vmem>>) attributes {dimension_semantics = [#tpu.dimension_semantics<parallel>, #tpu.dimension_semantics<parallel>], iteration_bounds = array<i64: 1, 1>, scalar_prefetch = 0 : i64, scratch_operands = 0 : i64, tpu.core_type = #tpu.core_type<tc>, window_params = [{transform_indices = @transform_0, window_bounds = array<i64: 32, 32>}, {transform_indices = @transform_1, window_bounds = array<i64: 32, 128>}, {transform_indices = @transform_2, window_bounds = array<i64: 1, 128>}, {transform_indices = @transform_3, window_bounds = array<i64: 32, 128>}]} {
    %c0 = arith.constant 0 : index
    %c0_0 = arith.constant 0 : index
    %0 = vector.load %arg2[%c0, %c0_0] : memref<32x32xf32, #tpu.memory_space<vmem>>, vector<32x32xf32>
    %c0_1 = arith.constant 0 : index
    %c0_2 = arith.constant 0 : index
    %1 = vector.load %arg3[%c0_1, %c0_2] : memref<32x128xf32, #tpu.memory_space<vmem>>, vector<32x128xf32>
    %cst = arith.constant dense<0.000000e+00> : vector<32x128xf32>
    %2 = tpu.matmul %0, %1, %cst {dimension_numbers = #tpu.dot_dimension_numbers<[1], [0], [0], [1], [0, 0, 1, 1], [], []>} : vector<32x32xf32>, vector<32x128xf32>, vector<32x128xf32> -> vector<32x128xf32>
    %c0_3 = arith.constant 0 : index
    %c0_4 = arith.constant 0 : index
    %3 = vector.load %arg4[%c0_3, %c0_4] : memref<1x128xf32, #tpu.memory_space<vmem>>, vector<1x128xf32>
    %4 = vector.broadcast %3 : vector<1x128xf32> to vector<32x128xf32>
    %5 = arith.addf %2, %4 : vector<32x128xf32>
    %c0_5 = arith.constant 0 : index
    %c0_6 = arith.constant 0 : index
    %6 = vector.load %arg5[%c0_5, %c0_6] : memref<32x128xf32, #tpu.memory_space<vmem>>, vector<32x128xf32>
    tpu.vector_store %arg5[%c0_5, %c0_6], %5 {strides = array<i32>} : memref<32x128xf32, #tpu.memory_space<vmem>>, vector<32x128xf32>,
    return
  }
  func.func @transform_0(%arg0: i32, %arg1: i32) -> (i32, i32) {
    %c0_i32 = arith.constant 0 : i32
    %c0_i32_0 = arith.constant 0 : i32
    return %arg0, %c0_i32 : i32, i32
  }
  func.func @transform_1(%arg0: i32, %arg1: i32) -> (i32, i32) {
    %c0_i32 = arith.constant 0 : i32
    %c0_i32_0 = arith.constant 0 : i32
    return %c0_i32, %arg1 : i32, i32
  }
  func.func @transform_2(%arg0: i32, %arg1: i32) -> (i32, i32) {
    %c0_i32 = arith.constant 0 : i32
    %c0_i32_0 = arith.constant 0 : i32
    return %c0_i32, %arg1 : i32, i32
  }
  func.func @transform_3(%arg0: i32, %arg1: i32) -> (i32, i32) {
    %c0_i32 = arith.constant 0 : i32
    return %arg0, %arg1 : i32, i32
  }
}

module attributes {stable_mosaic.version = 11 : i64} {
  func.func @linear_kernel(%arg0: i32, %arg1: i32, %arg2: memref<32x32xf32, #tpu.memory_space<vmem>>, %arg3: memref<32x32xf32, #tpu.memory_space<vmem>>, %arg4: memref<1x32xf32, #tpu.memory_space<vmem>>, %arg5: memref<32x32xf32, #tpu.memory_space<vmem>>) attributes {dimension_semantics = [#tpu.dimension_semantics<parallel>, #tpu.dimension_semantics<parallel>], iteration_bounds = array<i64: 1, 1>, scalar_prefetch = 0 : i64, scratch_operands = 0 : i64, tpu.core_type = #tpu.core_type<tc>, window_params = [{transform_indices = @transform_0, window_bounds = array<i64: 32, 32>}, {transform_indices = @transform_1, window_bounds = array<i64: 32, 32>}, {transform_indices = @transform_2, window_bounds = array<i64: 1, 32>}, {transform_indices = @transform_3, window_bounds = array<i64: 32, 32>}]} {
    %c0 = arith.constant 0 : index
    %c0_0 = arith.constant 0 : index
    %0 = vector.load %arg2[%c0, %c0_0] : memref<32x32xf32, #tpu.memory_space<vmem>>, vector<32x32xf32>
    %c0_1 = arith.constant 0 : index
    %c0_2 = arith.constant 0 : index
    %1 = vector.load %arg3[%c0_1, %c0_2] : memref<32x32xf32, #tpu.memory_space<vmem>>, vector<32x32xf32>
    %cst = arith.constant dense<0.000000e+00> : vector<32x32xf32>
    %2 = tpu.matmul %0, %1, %cst {dimension_numbers = #tpu.dot_dimension_numbers<[1], [0], [0], [1], [0, 0, 1, 1], [], []>} : vector<32x32xf32>, vector<32x32xf32>, vector<32x32xf32> -> vector<32x32xf32>
    %c0_3 = arith.constant 0 : index
    %c0_4 = arith.constant 0 : index
    %3 = vector.load %arg4[%c0_3, %c0_4] : memref<1x32xf32, #tpu.memory_space<vmem>>, vector<1x32xf32>
    %4 = vector.broadcast %3 : vector<1x32xf32> to vector<32x32xf32>
    %5 = arith.addf %2, %4 : vector<32x32xf32>
    %c0_5 = arith.constant 0 : index
    %c0_6 = arith.constant 0 : index
    %6 = vector.load %arg5[%c0_5, %c0_6] : memref<32x32xf32, #tpu.memory_space<vmem>>, vector<32x32xf32>
    tpu.vector_store %arg5[%c0_5, %c0_6], %5 {strides = array<i32>} : memref<32x32xf32, #tpu.memory_space<vmem>>, vector<32x32xf32>,
    return
  }
  func.func @transform_0(%arg0: i32, %arg1: i32) -> (i32, i32) {
    %c0_i32 = arith.constant 0 : i32
    %c0_i32_0 = arith.constant 0 : i32
    return %arg0, %c0_i32 : i32, i32
  }
  func.func @transform_1(%arg0: i32, %arg1: i32) -> (i32, i32) {
    %c0_i32 = arith.constant 0 : i32
    %c0_i32_0 = arith.constant 0 : i32
    return %c0_i32, %arg1 : i32, i32
  }
  func.func @transform_2(%arg0: i32, %arg1: i32) -> (i32, i32) {
    %c0_i32 = arith.constant 0 : i32
    %c0_i32_0 = arith.constant 0 : i32
    return %c0_i32, %arg1 : i32, i32
  }
  func.func @transform_3(%arg0: i32, %arg1: i32) -> (i32, i32) {
    %c0_i32 = arith.constant 0 : i32
    return %arg0, %arg1 : i32, i32
  }
}

</mosaic_0001>

<llo_original>
// kernel: model_forward.7
$region0: #{model_forward.7}
  #allocation0 [shape = 'u32[]', space=smem, size = 0x4, offset = 0x4, fixed_abs, tag = 'smem constant byte address 0x4 - core index']
  #allocation1 [shape = 'u32[144,128]{1,0:T(1,128)}', space=vmem, size = 0x12000, scoped, tag = 'internal scratch']
  %s0 = inlined_call_operand.vmem [shape: f32[32,32], index: 0, kind: input, shape index: {}]
  %s1 = inlined_call_operand.vmem [shape: f32[32,128], index: 1, kind: input, shape index: {}]
  %s2 = inlined_call_operand.vmem [shape: f32[1,128], index: 2, kind: input, shape index: {}]
  %s3 = inlined_call_operand.vmem [shape: f32[32,128], index: 3, kind: output, shape index: {}]
  %s4 = sld [smem:[#allocation0]]
  $region22: #{model_forward.7} parent=0
    _
  %s6 = ssub.s32 1, %s4
  %s7 = scalar_select 0, %s6, %s4
  // Predicated region
  $region2: #{model_forward.7} parent=0 // pred_check
    _
  $region3: #{model_forward.7} parent=0 // pred_check_branch
    %9 = sbr.rel (0) target = $region5
  $region4: #{model_forward.7} parent=0 // pred_region
    _
  $region5: #{model_forward.7} parent=0 // pred_fallthru
    _
  // Predicated region
  $region6: #{model_forward.7} parent=0 // pred_check
    _
  $region7: #{model_forward.7} parent=0 // pred_check_branch
    %11 = sbr.rel (0) target = $region9
  $region8: #{model_forward.7} parent=0 // pred_region
    _
  $region9: #{model_forward.7} parent=0 // pred_fallthru
    _
  // Predicated region
  $region10: #{model_forward.7} parent=0 // pred_check
    _
  $region11: #{model_forward.7} parent=0 // pred_check_branch
    %13 = sbr.rel (0) target = $region13
  $region12: #{model_forward.7} parent=0 // pred_region
    _
  $region13: #{model_forward.7} parent=0 // pred_fallthru
    _
  %v14 = vld [vmem:[%s0] sm:$0xff]
  %v15 = vld [vmem:[%s0 + $0x8] sm:$0xff]
  %v16 = vld [vmem:[%s0 + $0x10] sm:$0xff]
  %v17 = vld [vmem:[%s0 + $0x18] sm:$0xff]
  %v18 = vld [vmem:[%s1] sm:$0xff]
  %v19 = vld [vmem:[%s1 + $0x8] sm:$0xff]
  %v20 = vld [vmem:[%s1 + $0x10] sm:$0xff]
  %v21 = vld [vmem:[%s1 + $0x18] sm:$0xff]
  %v22 = vld [vmem:[%s2] sm:$0x1]
  %v24 = vlaneseq
  %v25 = vshrl.u32 %v24, 7
  %v26 = vsub.s32 0, %v25
  %v27 = vrot.slane %v22, %v26
  %vm29 = vcmask 261120
  %v31 = vsel %vm29, %v14, 0
  %v34 = vsel %vm29, %v15, 0
  %v37 = vsel %vm29, %v16, 0
  %v40 = vsel %vm29, %v17, 0
  %42 = vmatprep.subr.mxu0 0.0
  %43 = vmatpush1.msra.mxu0 0.0
  %44 = vmatprep.subr.mxu0 0.0
  %45 = vmatpush1.msra.mxu0 0.0
  %46 = vmatprep.subr.mxu0 0.0
  %47 = vmatpush1.msra.mxu0 0.0
  %48 = vmatprep.subr.mxu0 0.0
  %49 = vmatpush1.msra.mxu0 0.0
  %50 = vmatprep.subr.mxu0 0.0
  %51 = vmatpush1.msra.mxu0 0.0
  %52 = vmatprep.subr.mxu0 0.0
  %53 = vmatpush1.msra.mxu0 0.0
  %54 = vmatprep.subr.mxu0 0.0
  %55 = vmatpush1.msra.mxu0 0.0
  %56 = vmatprep.subr.mxu0 0.0
  %57 = vmatpush1.msra.mxu0 0.0
  %58 = vmatprep.subr.mxu0 0.0
  %59 = vmatpush1.msra.mxu0 0.0
  %60 = vmatprep.subr.mxu0 0.0
  %61 = vmatpush1.msra.mxu0 0.0
  %62 = vmatprep.subr.mxu0 0.0
  %63 = vmatpush1.msra.mxu0 0.0
  %64 = vmatprep.subr.mxu0 0.0
  %65 = vmatpush1.msra.mxu0 0.0
  %66 = vmatprep.subr.mxu0 0.0
  %67 = vmatpush1.msra.mxu0 %v21
  %68 = vmatprep.subr.mxu0 0.0
  %69 = vmatpush1.msra.mxu0 %v20
  %70 = vmatprep.subr.mxu0 0.0
  %71 = vmatpush1.msra.mxu0 %v19
  %72 = vmatprep.subr.mxu0 0.0
  %73 = vmatpush1.msra.mxu0 %v18
  %74 = vmatprep.subr.mxu0 0.0
  %75 = vmatpush2.msra.mxu0 0.0
  %76 = vmatprep.subr.mxu0 0.0
  %77 = vmatpush2.msra.mxu0 0.0
  %78 = vmatprep.subr.mxu0 0.0
  %79 = vmatpush2.msra.mxu0 0.0
  %80 = vmatprep.subr.mxu0 0.0
  %81 = vmatpush2.msra.mxu0 0.0
  %82 = vmatprep.subr.mxu0 0.0
  %83 = vmatpush2.msra.mxu0 0.0
  %84 = vmatprep.subr.mxu0 0.0
  %85 = vmatpush2.msra.mxu0 0.0
  %86 = vmatprep.subr.mxu0 0.0
  %87 = vmatpush2.msra.mxu0 0.0
  %88 = vmatprep.subr.mxu0 0.0
  %89 = vmatpush2.msra.mxu0 0.0
  %90 = vmatprep.subr.mxu0 0.0
  %91 = vmatpush2.msra.mxu0 0.0
  %92 = vmatprep.subr.mxu0 0.0
  %93 = vmatpush2.msra.mxu0 0.0
  %94 = vmatprep.subr.mxu0 0.0
  %95 = vmatpush2.msra.mxu0 0.0
  %96 = vmatprep.subr.mxu0 0.0
  %97 = vmatpush2.msra.mxu0 0.0
  %98 = vmatprep.subr.mxu0 0.0
  %99 = vmatpush2.msra.mxu0 0.0
  %100 = vmatprep.subr.mxu0 0.0
  %101 = vmatpush2.msra.mxu0 0.0
  %102 = vmatprep.subr.mxu0 0.0
  %103 = vmatpush2.msra.mxu0 0.0
  %104 = vmatprep.subr.mxu0 0.0
  %105 = vmatpush2.msra.mxu0 0.0
  %106 = vmatprep.mubr.f32.mxu0 0.0
  %107 = vmatmul.mubr.f32.gmra.mxu0 %v31
  %v108 = vpop.f32.mrf.mxu0
  %v109 = vadd.f32 %v27, %v108
  %v110 = vpop.f32.mrf.mxu0
  %111 = vmatprep.mubr.f32.mxu0 0.0
  %112 = vmatmul.mubr.f32.gmra.mxu0 %v34
  %v113 = vpop.f32.mrf.mxu0
  %v114 = vadd.f32 %v27, %v113
  %v115 = vpop.f32.mrf.mxu0
  %116 = vmatprep.mubr.f32.mxu0 0.0
  %117 = vmatmul.mubr.f32.gmra.mxu0 %v37
  %v118 = vpop.f32.mrf.mxu0
  %v119 = vadd.f32 %v27, %v118
  %v120 = vpop.f32.mrf.mxu0
  %121 = vmatprep.mubr.f32.mxu0 0.0
  %122 = vmatmul.mubr.f32.gmra.mxu0 %v40
  %v123 = vpop.f32.mrf.mxu0
  %v124 = vadd.f32 %v27, %v123
  %v125 = vpop.f32.mrf.mxu0
  %126 = vdwg.mxu0
  %127 = vst [vmem:[%s3] sm:$0xff] %v109
  %128 = vst [vmem:[%s3 + $0x8] sm:$0xff] %v114
  %129 = vst [vmem:[%s3 + $0x10] sm:$0xff] %v119
  %130 = vst [vmem:[%s3 + $0x18] sm:$0xff] %v124
  // Predicated region
  $region14: #{model_forward.7} parent=0 // pred_check
    _
  $region15: #{model_forward.7} parent=0 // pred_check_branch
    %132 = sbr.rel (0) target = $region17
  $region16: #{model_forward.7} parent=0 // pred_region
    _
  $region17: #{model_forward.7} parent=0 // pred_fallthru
    _
  // Predicated region
  $region18: #{model_forward.7} parent=0 // pred_check
    _
  $region19: #{model_forward.7} parent=0 // pred_check_branch
    %134 = sbr.rel (0) target = $region21
  $region20: #{model_forward.7} parent=0 // pred_region
    _
  $region21: #{model_forward.7} parent=0 // pred_fallthru
    _

// kernel: model_forward.9
$region0: #{model_forward.9}
  #allocation0 [shape = 'u32[]', space=smem, size = 0x4, offset = 0x4, fixed_abs, tag = 'smem constant byte address 0x4 - core index']
  #allocation1 [shape = 'u32[144,128]{1,0:T(1,128)}', space=vmem, size = 0x12000, scoped, tag = 'internal scratch']
  %s0 = inlined_call_operand.vmem [shape: f32[32,32], index: 0, kind: input, shape index: {}]
  %s1 = inlined_call_operand.vmem [shape: f32[32,32], index: 1, kind: input, shape index: {}]
  %s2 = inlined_call_operand.vmem [shape: f32[1,32], index: 2, kind: input, shape index: {}]
  %s3 = inlined_call_operand.hbm [shape: f32[32,32], index: 3, kind: output, shape index: {}]
  %s4 = sld [smem:[#allocation0]]
  $region22: #{model_forward.9} parent=0
    _
  %s6 = ssub.s32 1, %s4
  %s7 = scalar_select 0, %s6, %s4
  $region1: #{model_forward.9} parent=0
    #allocation2 [shape = 'u8[16384]{0}', space=vmem, size = 0x4000, scoped, tag = 'output window, operand 0, single buffered']
    #allocation3 [shape = 's32[1]{0}', space=sflag, size = 0x4, scoped, tag = 'scoped memory for model_forward.9']
    %8 = vsyncpa [#allocation3], 0
    // Predicated region
    $region2: #{model_forward.9} parent=1 // pred_check
      _
    $region3: #{model_forward.9} parent=1 // pred_check_branch
      %10 = sbr.rel (0) target = $region5
    $region4: #{model_forward.9} parent=1 // pred_region
      _
    $region5: #{model_forward.9} parent=1 // pred_fallthru
      _
    // Predicated region
    $region6: #{model_forward.9} parent=1 // pred_check
      _
    $region7: #{model_forward.9} parent=1 // pred_check_branch
      %12 = sbr.rel (0) target = $region9
    $region8: #{model_forward.9} parent=1 // pred_region
      _
    $region9: #{model_forward.9} parent=1 // pred_fallthru
      _
    // Predicated region
    $region10: #{model_forward.9} parent=1 // pred_check
      _
    $region11: #{model_forward.9} parent=1 // pred_check_branch
      %14 = sbr.rel (0) target = $region13
    $region12: #{model_forward.9} parent=1 // pred_region
      _
    $region13: #{model_forward.9} parent=1 // pred_fallthru
      _
    %v15 = vld [vmem:[%s0] sm:$0xff]
    %v16 = vld [vmem:[%s0 + $0x8] sm:$0xff]
    %v17 = vld [vmem:[%s0 + $0x10] sm:$0xff]
    %v18 = vld [vmem:[%s0 + $0x18] sm:$0xff]
    %v19 = vld [vmem:[%s1] sm:$0xff]
    %v20 = vld [vmem:[%s1 + $0x8] sm:$0xff]
    %v21 = vld [vmem:[%s1 + $0x10] sm:$0xff]
    %v22 = vld [vmem:[%s1 + $0x18] sm:$0xff]
    %v23 = vld [vmem:[%s2] sm:$0x1]
    %v25 = vlaneseq
    %v26 = vshrl.u32 %v25, 7
    %v27 = vsub.s32 0, %v26
    %v28 = vrot.slane %v23, %v27
    %vm30 = vcmask 261120
    %v32 = vsel %vm30, %v15, 0
    %v35 = vsel %vm30, %v16, 0
    %v38 = vsel %vm30, %v17, 0
    %v41 = vsel %vm30, %v18, 0
    %43 = vmatprep.subr.mxu0 0.0
    %44 = vmatpush1.msra.mxu0 0.0
    %45 = vmatprep.subr.mxu0 0.0
    %46 = vmatpush1.msra.mxu0 0.0
    %47 = vmatprep.subr.mxu0 0.0
    %48 = vmatpush1.msra.mxu0 0.0
    %49 = vmatprep.subr.mxu0 0.0
    %50 = vmatpush1.msra.mxu0 0.0
    %51 = vmatprep.subr.mxu0 0.0
    %52 = vmatpush1.msra.mxu0 0.0
    %53 = vmatprep.subr.mxu0 0.0
    %54 = vmatpush1.msra.mxu0 0.0
    %55 = vmatprep.subr.mxu0 0.0
    %56 = vmatpush1.msra.mxu0 0.0
    %57 = vmatprep.subr.mxu0 0.0
    %58 = vmatpush1.msra.mxu0 0.0
    %59 = vmatprep.subr.mxu0 0.0
    %60 = vmatpush1.msra.mxu0 0.0
    %61 = vmatprep.subr.mxu0 0.0
    %62 = vmatpush1.msra.mxu0 0.0
    %63 = vmatprep.subr.mxu0 0.0
    %64 = vmatpush1.msra.mxu0 0.0
    %65 = vmatprep.subr.mxu0 0.0
    %66 = vmatpush1.msra.mxu0 0.0
    %67 = vmatprep.subr.mxu0 0.0
    %68 = vmatpush1.msra.mxu0 %v22
    %69 = vmatprep.subr.mxu0 0.0
    %70 = vmatpush1.msra.mxu0 %v21
    %71 = vmatprep.subr.mxu0 0.0
    %72 = vmatpush1.msra.mxu0 %v20
    %73 = vmatprep.subr.mxu0 0.0
    %74 = vmatpush1.msra.mxu0 %v19
    %75 = vmatprep.subr.mxu0 0.0
    %76 = vmatpush2.msra.mxu0 0.0
    %77 = vmatprep.subr.mxu0 0.0
    %78 = vmatpush2.msra.mxu0 0.0
    %79 = vmatprep.subr.mxu0 0.0
    %80 = vmatpush2.msra.mxu0 0.0
    %81 = vmatprep.subr.mxu0 0.0
    %82 = vmatpush2.msra.mxu0 0.0
    %83 = vmatprep.subr.mxu0 0.0
    %84 = vmatpush2.msra.mxu0 0.0
    %85 = vmatprep.subr.mxu0 0.0
    %86 = vmatpush2.msra.mxu0 0.0
    %87 = vmatprep.subr.mxu0 0.0
    %88 = vmatpush2.msra.mxu0 0.0
    %89 = vmatprep.subr.mxu0 0.0
    %90 = vmatpush2.msra.mxu0 0.0
    %91 = vmatprep.subr.mxu0 0.0
    %92 = vmatpush2.msra.mxu0 0.0
    %93 = vmatprep.subr.mxu0 0.0
    %94 = vmatpush2.msra.mxu0 0.0
    %95 = vmatprep.subr.mxu0 0.0
    %96 = vmatpush2.msra.mxu0 0.0
    %97 = vmatprep.subr.mxu0 0.0
    %98 = vmatpush2.msra.mxu0 0.0
    %99 = vmatprep.subr.mxu0 0.0
    %100 = vmatpush2.msra.mxu0 0.0
    %101 = vmatprep.subr.mxu0 0.0
    %102 = vmatpush2.msra.mxu0 0.0
    %103 = vmatprep.subr.mxu0 0.0
    %104 = vmatpush2.msra.mxu0 0.0
    %105 = vmatprep.subr.mxu0 0.0
    %106 = vmatpush2.msra.mxu0 0.0
    %107 = vmatprep.mubr.f32.mxu0 0.0
    %108 = vmatmul.mubr.f32.gmra.mxu0 %v32
    %v109 = vpop.f32.mrf.mxu0
    %v110 = vadd.f32 %v28, %v109
    %v111 = vpop.f32.mrf.mxu0
    %112 = vmatprep.mubr.f32.mxu0 0.0
    %113 = vmatmul.mubr.f32.gmra.mxu0 %v35
    %v114 = vpop.f32.mrf.mxu0
    %v115 = vadd.f32 %v28, %v114
    %v116 = vpop.f32.mrf.mxu0
    %117 = vmatprep.mubr.f32.mxu0 0.0
    %118 = vmatmul.mubr.f32.gmra.mxu0 %v38
    %v119 = vpop.f32.mrf.mxu0
    %v120 = vadd.f32 %v28, %v119
    %v121 = vpop.f32.mrf.mxu0
    %122 = vmatprep.mubr.f32.mxu0 0.0
    %123 = vmatmul.mubr.f32.gmra.mxu0 %v41
    %v124 = vpop.f32.mrf.mxu0
    %v125 = vadd.f32 %v28, %v124
    %v126 = vpop.f32.mrf.mxu0
    %127 = vdwg.mxu0
    %128 = vst.msk [vmem:[#allocation2] sm:$0xff] %vm30, %v110
    %129 = vst.msk [vmem:[#allocation2 + $0x8] sm:$0xff] %vm30, %v115
    %130 = vst.msk [vmem:[#allocation2 + $0x10] sm:$0xff] %vm30, %v120
    %131 = vst.msk [vmem:[#allocation2 + $0x18] sm:$0xff] %vm30, %v125
    // Predicated region
    $region14: #{model_forward.9} parent=1 // pred_check
      _
    $region15: #{model_forward.9} parent=1 // pred_check_branch
      %133 = sbr.rel (0) target = $region17
    $region16: #{model_forward.9} parent=1 // pred_region
      %s135 = ssub.s32 512, 512
      %136 = vsyncadd [#allocation3], %s135
      %s137 = sshll.u32 [#allocation2], 4
      %s138 = int_to_ptr.vmem [resolvable:$true] %s137
      %143 = dma.vmem_to_hbm [thread:$0]  %s138, 512, %s3, [#allocation3], 128, 128, 8
    $region17: #{model_forward.9} parent=1 // pred_fallthru
      _
    // Predicated region
    $region18: #{model_forward.9} parent=1 // pred_check
      _
    $region19: #{model_forward.9} parent=1 // pred_check_branch
      %145 = sbr.rel (0) target = $region21
    $region20: #{model_forward.9} parent=1 // pred_region
      %146 = dma.done [#allocation3], 512
    $region21: #{model_forward.9} parent=1 // pred_fallthru
      _
    %147 = vsyncpa [#allocation3], 1

// kernel: model_forward.5
$region0: #{model_forward.5}
  #allocation0 [shape = 'u32[]', space=smem, size = 0x4, offset = 0x4, fixed_abs, tag = 'smem constant byte address 0x4 - core index']
  #allocation1 [shape = 'u32[144,128]{1,0:T(1,128)}', space=vmem, size = 0x12000, scoped, tag = 'internal scratch']
  %s0 = inlined_call_operand.vmem [shape: f32[32,16], index: 0, kind: input, shape index: {}]
  %s1 = inlined_call_operand.vmem [shape: f32[16,128], index: 1, kind: input, shape index: {}]
  %s2 = inlined_call_operand.vmem [shape: f32[1,128], index: 2, kind: input, shape index: {}]
  %s3 = inlined_call_operand.vmem [shape: f32[32,128], index: 3, kind: output, shape index: {}]
  %s4 = sld [smem:[#allocation0]]
  $region22: #{model_forward.5} parent=0
    _
  %s6 = ssub.s32 1, %s4
  %s7 = scalar_select 0, %s6, %s4
  // Predicated region
  $region2: #{model_forward.5} parent=0 // pred_check
    _
  $region3: #{model_forward.5} parent=0 // pred_check_branch
    %9 = sbr.rel (0) target = $region5
  $region4: #{model_forward.5} parent=0 // pred_region
    _
  $region5: #{model_forward.5} parent=0 // pred_fallthru
    _
  // Predicated region
  $region6: #{model_forward.5} parent=0 // pred_check
    _
  $region7: #{model_forward.5} parent=0 // pred_check_branch
    %11 = sbr.rel (0) target = $region9
  $region8: #{model_forward.5} parent=0 // pred_region
    _
  $region9: #{model_forward.5} parent=0 // pred_fallthru
    _
  // Predicated region
  $region10: #{model_forward.5} parent=0 // pred_check
    _
  $region11: #{model_forward.5} parent=0 // pred_check_branch
    %13 = sbr.rel (0) target = $region13
  $region12: #{model_forward.5} parent=0 // pred_region
    _
  $region13: #{model_forward.5} parent=0 // pred_fallthru
    _
  %v14 = vld [vmem:[%s0] sm:$0xff]
  %v15 = vld [vmem:[%s0 + $0x8] sm:$0xff]
  %v16 = vld [vmem:[%s0 + $0x10] sm:$0xff]
  %v17 = vld [vmem:[%s0 + $0x18] sm:$0xff]
  %v18 = vld [vmem:[%s1] sm:$0xff]
  %v19 = vld [vmem:[%s1 + $0x8] sm:$0xff]
  %v20 = vld [vmem:[%s2] sm:$0x1]
  %v22 = vlaneseq
  %v23 = vshrl.u32 %v22, 7
  %v24 = vsub.s32 0, %v23
  %v25 = vrot.slane %v20, %v24
  %vm27 = vcmask 130048
  %v29 = vsel %vm27, %v14, 0
  %v32 = vsel %vm27, %v15, 0
  %v35 = vsel %vm27, %v16, 0
  %v38 = vsel %vm27, %v17, 0
  %40 = vmatprep.subr.mxu0 0.0
  %41 = vmatpush1.msra.mxu0 0.0
  %42 = vmatprep.subr.mxu0 0.0
  %43 = vmatpush1.msra.mxu0 0.0
  %44 = vmatprep.subr.mxu0 0.0
  %45 = vmatpush1.msra.mxu0 0.0
  %46 = vmatprep.subr.mxu0 0.0
  %47 = vmatpush1.msra.mxu0 0.0
  %48 = vmatprep.subr.mxu0 0.0
  %49 = vmatpush1.msra.mxu0 0.0
  %50 = vmatprep.subr.mxu0 0.0
  %51 = vmatpush1.msra.mxu0 0.0
  %52 = vmatprep.subr.mxu0 0.0
  %53 = vmatpush1.msra.mxu0 0.0
  %54 = vmatprep.subr.mxu0 0.0
  %55 = vmatpush1.msra.mxu0 0.0
  %56 = vmatprep.subr.mxu0 0.0
  %57 = vmatpush1.msra.mxu0 0.0
  %58 = vmatprep.subr.mxu0 0.0
  %59 = vmatpush1.msra.mxu0 0.0
  %60 = vmatprep.subr.mxu0 0.0
  %61 = vmatpush1.msra.mxu0 0.0
  %62 = vmatprep.subr.mxu0 0.0
  %63 = vmatpush1.msra.mxu0 0.0
  %64 = vmatprep.subr.mxu0 0.0
  %65 = vmatpush1.msra.mxu0 0.0
  %66 = vmatprep.subr.mxu0 0.0
  %67 = vmatpush1.msra.mxu0 0.0
  %68 = vmatprep.subr.mxu0 0.0
  %69 = vmatpush1.msra.mxu0 %v19
  %70 = vmatprep.subr.mxu0 0.0
  %71 = vmatpush1.msra.mxu0 %v18
  %72 = vmatprep.subr.mxu0 0.0
  %73 = vmatpush2.msra.mxu0 0.0
  %74 = vmatprep.subr.mxu0 0.0
  %75 = vmatpush2.msra.mxu0 0.0
  %76 = vmatprep.subr.mxu0 0.0
  %77 = vmatpush2.msra.mxu0 0.0
  %78 = vmatprep.subr.mxu0 0.0
  %79 = vmatpush2.msra.mxu0 0.0
  %80 = vmatprep.subr.mxu0 0.0
  %81 = vmatpush2.msra.mxu0 0.0
  %82 = vmatprep.subr.mxu0 0.0
  %83 = vmatpush2.msra.mxu0 0.0
  %84 = vmatprep.subr.mxu0 0.0
  %85 = vmatpush2.msra.mxu0 0.0
  %86 = vmatprep.subr.mxu0 0.0
  %87 = vmatpush2.msra.mxu0 0.0
  %88 = vmatprep.subr.mxu0 0.0
  %89 = vmatpush2.msra.mxu0 0.0
  %90 = vmatprep.subr.mxu0 0.0
  %91 = vmatpush2.msra.mxu0 0.0
  %92 = vmatprep.subr.mxu0 0.0
  %93 = vmatpush2.msra.mxu0 0.0
  %94 = vmatprep.subr.mxu0 0.0
  %95 = vmatpush2.msra.mxu0 0.0
  %96 = vmatprep.subr.mxu0 0.0
  %97 = vmatpush2.msra.mxu0 0.0
  %98 = vmatprep.subr.mxu0 0.0
  %99 = vmatpush2.msra.mxu0 0.0
  %100 = vmatprep.subr.mxu0 0.0
  %101 = vmatpush2.msra.mxu0 0.0
  %102 = vmatprep.subr.mxu0 0.0
  %103 = vmatpush2.msra.mxu0 0.0
  %104 = vmatprep.mubr.f32.mxu0 0.0
  %105 = vmatmul.mubr.f32.gmra.mxu0 %v29
  %v106 = vpop.f32.mrf.mxu0
  %v107 = vadd.f32 %v25, %v106
  %v108 = vpop.f32.mrf.mxu0
  %109 = vmatprep.mubr.f32.mxu0 0.0
  %110 = vmatmul.mubr.f32.gmra.mxu0 %v32
  %v111 = vpop.f32.mrf.mxu0
  %v112 = vadd.f32 %v25, %v111
  %v113 = vpop.f32.mrf.mxu0
  %114 = vmatprep.mubr.f32.mxu0 0.0
  %115 = vmatmul.mubr.f32.gmra.mxu0 %v35
  %v116 = vpop.f32.mrf.mxu0
  %v117 = vadd.f32 %v25, %v116
  %v118 = vpop.f32.mrf.mxu0
  %119 = vmatprep.mubr.f32.mxu0 0.0
  %120 = vmatmul.mubr.f32.gmra.mxu0 %v38
  %v121 = vpop.f32.mrf.mxu0
  %v122 = vadd.f32 %v25, %v121
  %v123 = vpop.f32.mrf.mxu0
  %124 = vdwg.mxu0
  %125 = vst [vmem:[%s3] sm:$0xff] %v107
  %126 = vst [vmem:[%s3 + $0x8] sm:$0xff] %v112
  %127 = vst [vmem:[%s3 + $0x10] sm:$0xff] %v117
  %128 = vst [vmem:[%s3 + $0x18] sm:$0xff] %v122
  // Predicated region
  $region14: #{model_forward.5} parent=0 // pred_check
    _
  $region15: #{model_forward.5} parent=0 // pred_check_branch
    %130 = sbr.rel (0) target = $region17
  $region16: #{model_forward.5} parent=0 // pred_region
    _
  $region17: #{model_forward.5} parent=0 // pred_fallthru
    _
  // Predicated region
  $region18: #{model_forward.5} parent=0 // pred_check
    _
  $region19: #{model_forward.5} parent=0 // pred_check_branch
    %132 = sbr.rel (0) target = $region21
  $region20: #{model_forward.5} parent=0 // pred_region
    _
  $region21: #{model_forward.5} parent=0 // pred_fallthru
    _

// kernel: model_forward.6
$region0: #{model_forward.6}
  #allocation0 [shape = 'u32[]', space=smem, size = 0x4, offset = 0x4, fixed_abs, tag = 'smem constant byte address 0x4 - core index']
  #allocation1 [shape = 'u32[144,128]{1,0:T(1,128)}', space=vmem, size = 0x12000, scoped, tag = 'internal scratch']
  #allocation2 [shape = 'f32[4,32]{1,0:T(4,128)}', space=vmem, size = 0x800, scoped, tag = 'scratch operand']
  #allocation3 [shape = 'f32[4,32]{1,0:T(4,128)}', space=vmem, size = 0x800, scoped, tag = 'scratch operand']
  %s0 = inlined_call_operand.vmem [shape: f32[8,4,128], index: 0, kind: input, shape index: {}]
  %s1 = inlined_call_operand.vmem [shape: f32[4,32], index: 1, kind: input, shape index: {}]
  %s2 = inlined_call_operand.vmem [shape: f32[4,32], index: 2, kind: input, shape index: {}]
  %s3 = inlined_call_operand.vmem [shape: f32[32,128], index: 3, kind: input, shape index: {}]
  %s4 = inlined_call_operand.vmem [shape: f32[8,4,32], index: 4, kind: output, shape index: {0}]
  %s5 = inlined_call_operand.vmem [shape: f32[4,32], index: 5, kind: output, shape index: {1}]
  %s6 = inlined_call_operand.vmem [shape: f32[4,32], index: 6, kind: output, shape index: {2}]
  %7 = xla_tuple %s4, %s5, %s6
  %s8 = sld [smem:[#allocation0]]
  $region46: #{model_forward.6} parent=0
    _
  %s10 = ssub.s32 1, %s8
  %s11 = scalar_select 0, %s10, %s8
  // Predicated region
  $region2: #{model_forward.6} parent=0 // pred_check
    _
  $region3: #{model_forward.6} parent=0 // pred_check_branch
    %13 = sbr.rel (0) target = $region5
  $region4: #{model_forward.6} parent=0 // pred_region
    _
  $region5: #{model_forward.6} parent=0 // pred_fallthru
    _
  // Predicated region
  $region6: #{model_forward.6} parent=0 // pred_check
    _
  $region7: #{model_forward.6} parent=0 // pred_check_branch
    %15 = sbr.rel (0) target = $region9
  $region8: #{model_forward.6} parent=0 // pred_region
    _
  $region9: #{model_forward.6} parent=0 // pred_fallthru
    _
  // Predicated region
  $region10: #{model_forward.6} parent=0 // pred_check
    _
  $region11: #{model_forward.6} parent=0 // pred_check_branch
    %17 = sbr.rel (0) target = $region13
  $region12: #{model_forward.6} parent=0 // pred_region
    _
  $region13: #{model_forward.6} parent=0 // pred_fallthru
    _
  // Predicated region
  $region14: #{model_forward.6} parent=0 // pred_check
    _
  $region15: #{model_forward.6} parent=0 // pred_check_branch
    %19 = sbr.rel (0) target = $region17
  $region16: #{model_forward.6} parent=0 // pred_region
    _
  $region17: #{model_forward.6} parent=0 // pred_fallthru
    _
  %p20 = scmp.eq.s32.totalorder 0, 0
  // Predicated region
  $region18: #{model_forward.6} parent=0 // pred_check
    %p21 = pneg %p20
  $region19: #{model_forward.6} parent=0 // pred_check_branch
    %23 = sbr.rel (%p21) target = $region21
  $region20: #{model_forward.6} parent=0 // pred_region
    %v24 = vld [vmem:[%s1] sm:$0xf]
    %vm25 = vcmask 257024
    %26 = vst.msk [vmem:[#allocation2] sm:$0xf] %vm25, %v24
    %v27 = vld [vmem:[%s2] sm:$0xf]
    %28 = vst.msk [vmem:[#allocation3] sm:$0xf] %vm25, %v27
  $region21: #{model_forward.6} parent=0 // pred_fallthru
    _
  %v29 = vld [vmem:[%s0] sm:$0xf]
  %v30 = vld [vmem:[#allocation2] sm:$0xf]
  %v31 = vld [vmem:[%s3] sm:$0xff]
  %v32 = vld [vmem:[%s3 + $0x8] sm:$0xff]
  %v33 = vld [vmem:[%s3 + $0x10] sm:$0xff]
  %v34 = vld [vmem:[%s3 + $0x18] sm:$0xff]
  %vm35 = vcmask 261120
  %v37 = vsel %vm35, %v30, 0
  %39 = vmatprep.subr.mxu0 0.0
  %40 = vmatpush1.msra.mxu0 0.0
  %41 = vmatprep.subr.mxu0 0.0
  %42 = vmatpush1.msra.mxu0 0.0
  %43 = vmatprep.subr.mxu0 0.0
  %44 = vmatpush1.msra.mxu0 0.0
  %45 = vmatprep.subr.mxu0 0.0
  %46 = vmatpush1.msra.mxu0 0.0
  %47 = vmatprep.subr.mxu0 0.0
  %48 = vmatpush1.msra.mxu0 0.0
  %49 = vmatprep.subr.mxu0 0.0
  %50 = vmatpush1.msra.mxu0 0.0
  %51 = vmatprep.subr.mxu0 0.0
  %52 = vmatpush1.msra.mxu0 0.0
  %53 = vmatprep.subr.mxu0 0.0
  %54 = vmatpush1.msra.mxu0 0.0
  %55 = vmatprep.subr.mxu0 0.0
  %56 = vmatpush1.msra.mxu0 0.0
  %57 = vmatprep.subr.mxu0 0.0
  %58 = vmatpush1.msra.mxu0 0.0
  %59 = vmatprep.subr.mxu0 0.0
  %60 = vmatpush1.msra.mxu0 0.0
  %61 = vmatprep.subr.mxu0 0.0
  %62 = vmatpush1.msra.mxu0 0.0
  %63 = vmatprep.subr.mxu0 0.0
  %64 = vmatpush1.msra.mxu0 %v34
  %65 = vmatprep.subr.mxu0 0.0
  %66 = vmatpush1.msra.mxu0 %v33
  %67 = vmatprep.subr.mxu0 0.0
  %68 = vmatpush1.msra.mxu0 %v32
  %69 = vmatprep.subr.mxu0 0.0
  %70 = vmatpush1.msra.mxu0 %v31
  %71 = vmatprep.subr.mxu0 0.0
  %72 = vmatpush2.msra.mxu0 0.0
  %73 = vmatprep.subr.mxu0 0.0
  %74 = vmatpush2.msra.mxu0 0.0
  %75 = vmatprep.subr.mxu0 0.0
  %76 = vmatpush2.msra.mxu0 0.0
  %77 = vmatprep.subr.mxu0 0.0
  %78 = vmatpush2.msra.mxu0 0.0
  %79 = vmatprep.subr.mxu0 0.0
  %80 = vmatpush2.msra.mxu0 0.0
  %81 = vmatprep.subr.mxu0 0.0
  %82 = vmatpush2.msra.mxu0 0.0
  %83 = vmatprep.subr.mxu0 0.0
  %84 = vmatpush2.msra.mxu0 0.0
  %85 = vmatprep.subr.mxu0 0.0
  %86 = vmatpush2.msra.mxu0 0.0
  %87 = vmatprep.subr.mxu0 0.0
  %88 = vmatpush2.msra.mxu0 0.0
  %89 = vmatprep.subr.mxu0 0.0
  %90 = vmatpush2.msra.mxu0 0.0
  %91 = vmatprep.subr.mxu0 0.0
  %92 = vmatpush2.msra.mxu0 0.0
  %93 = vmatprep.subr.mxu0 0.0
  %94 = vmatpush2.msra.mxu0 0.0
  %95 = vmatprep.subr.mxu0 0.0
  %96 = vmatpush2.msra.mxu0 0.0
  %97 = vmatprep.subr.mxu0 0.0
  %98 = vmatpush2.msra.mxu0 0.0
  %99 = vmatprep.subr.mxu0 0.0
  %100 = vmatpush2.msra.mxu0 0.0
  %101 = vmatprep.subr.mxu0 0.0
  %102 = vmatpush2.msra.mxu0 0.0
  %103 = vmatprep.mubr.f32.mxu0 0.0
  %104 = vmatmul.mubr.f32.gmra.mxu0 %v37
  %v105 = vpop.f32.mrf.mxu0
  %v106 = vadd.f32 0.0, %v105
  %v107 = vpop.f32.mrf.mxu0
  %108 = vdwg.mxu0
  %v109 = vadd.f32 %v29, %v106
  %v110 = vxor.u32 %v109, 2147483648
  %v111 = vmul.f32 %v110, 1.442695
  %v112 = vpow.pop %v111
  %v113 = vadd.f32 %v112, 1.0
  %v114 = vrcp.pop %v113
  %v115 = vmul.f32 1.0, %v114
  %v116 = vtanh.pop %v109
  %v117 = vld [vmem:[#allocation3] sm:$0xf]
  %119 = vrot.lane.b32.xlu0 %v117, 32
  %v120 = vpop.permute.xlu0 %119
  %v122 = vmul.f32 %v115, %v120
  %124 = vrot.lane.b32.xlu0 %v116, 64
  %v125 = vpop.permute.xlu0 %124
  %v127 = vmul.f32 %v115, %v125
  %129 = vrot.lane.b32.xlu0 %v127, 32
  %v130 = vpop.permute.xlu0 %129
  %v132 = vadd.f32 %v122, %v130
  %v133 = vtanh.pop %v132
  %135 = vrot.lane.b32.xlu0 %v133, 64
  %v136 = vpop.permute.xlu0 %135
  %v138 = vmul.f32 %v115, %v136
  %140 = vrot.lane.b32.xlu0 %v132, 96
  %v141 = vpop.permute.xlu0 %140
  %vm143 = vcmask 257024
  %144 = vst.msk [vmem:[#allocation3] sm:$0xf] %vm143, %v141
  %146 = vrot.lane.b32.xlu0 %v138, 32
  %v147 = vpop.permute.xlu0 %146
  %149 = vst.msk [vmem:[#allocation2] sm:$0xf] %vm143, %v147
  %150 = vst.msk [vmem:[%s4] sm:$0xf] %vm143, %v147
  %s151 = scalar_lea.vmem %s0, 4
  %v152 = vld [vmem:[%s151] sm:$0xf]
  %v153 = vld [vmem:[#allocation2] sm:$0xf]
  %v154 = vld [vmem:[%s3] sm:$0xff]
  %v155 = vld [vmem:[%s3 + $0x8] sm:$0xff]
  %v156 = vld [vmem:[%s3 + $0x10] sm:$0xff]
  %v157 = vld [vmem:[%s3 + $0x18] sm:$0xff]
  %v159 = vsel %vm35, %v153, 0
  %161 = vmatprep.subr.mxu0 0.0
  %162 = vmatpush1.msra.mxu0 0.0
  %163 = vmatprep.subr.mxu0 0.0
  %164 = vmatpush1.msra.mxu0 0.0
  %165 = vmatprep.subr.mxu0 0.0
  %166 = vmatpush1.msra.mxu0 0.0
  %167 = vmatprep.subr.mxu0 0.0
  %168 = vmatpush1.msra.mxu0 0.0
  %169 = vmatprep.subr.mxu0 0.0
  %170 = vmatpush1.msra.mxu0 0.0
  %171 = vmatprep.subr.mxu0 0.0
  %172 = vmatpush1.msra.mxu0 0.0
  %173 = vmatprep.subr.mxu0 0.0
  %174 = vmatpush1.msra.mxu0 0.0
  %175 = vmatprep.subr.mxu0 0.0
  %176 = vmatpush1.msra.mxu0 0.0
  %177 = vmatprep.subr.mxu0 0.0
  %178 = vmatpush1.msra.mxu0 0.0
  %179 = vmatprep.subr.mxu0 0.0
  %180 = vmatpush1.msra.mxu0 0.0
  %181 = vmatprep.subr.mxu0 0.0
  %182 = vmatpush1.msra.mxu0 0.0
  %183 = vmatprep.subr.mxu0 0.0
  %184 = vmatpush1.msra.mxu0 0.0
  %185 = vmatprep.subr.mxu0 0.0
  %186 = vmatpush1.msra.mxu0 %v157
  %187 = vmatprep.subr.mxu0 0.0
  %188 = vmatpush1.msra.mxu0 %v156
  %189 = vmatprep.subr.mxu0 0.0
  %190 = vmatpush1.msra.mxu0 %v155
  %191 = vmatprep.subr.mxu0 0.0
  %192 = vmatpush1.msra.mxu0 %v154
  %193 = vmatprep.subr.mxu0 0.0
  %194 = vmatpush2.msra.mxu0 0.0
  %195 = vmatprep.subr.mxu0 0.0
  %196 = vmatpush2.msra.mxu0 0.0
  %197 = vmatprep.subr.mxu0 0.0
  %198 = vmatpush2.msra.mxu0 0.0
  %199 = vmatprep.subr.mxu0 0.0
  %200 = vmatpush2.msra.mxu0 0.0
  %201 = vmatprep.subr.mxu0 0.0
  %202 = vmatpush2.msra.mxu0 0.0
  %203 = vmatprep.subr.mxu0 0.0
  %204 = vmatpush2.msra.mxu0 0.0
  %205 = vmatprep.subr.mxu0 0.0
  %206 = vmatpush2.msra.mxu0 0.0
  %207 = vmatprep.subr.mxu0 0.0
  %208 = vmatpush2.msra.mxu0 0.0
  %209 = vmatprep.subr.mxu0 0.0
  %210 = vmatpush2.msra.mxu0 0.0
  %211 = vmatprep.subr.mxu0 0.0
  %212 = vmatpush2.msra.mxu0 0.0
  %213 = vmatprep.subr.mxu0 0.0
  %214 = vmatpush2.msra.mxu0 0.0
  %215 = vmatprep.subr.mxu0 0.0
  %216 = vmatpush2.msra.mxu0 0.0
  %217 = vmatprep.subr.mxu0 0.0
  %218 = vmatpush2.msra.mxu0 0.0
  %219 = vmatprep.subr.mxu0 0.0
  %220 = vmatpush2.msra.mxu0 0.0
  %221 = vmatprep.subr.mxu0 0.0
  %222 = vmatpush2.msra.mxu0 0.0
  %223 = vmatprep.subr.mxu0 0.0
  %224 = vmatpush2.msra.mxu0 0.0
  %225 = vmatprep.mubr.f32.mxu0 0.0
  %226 = vmatmul.mubr.f32.gmra.mxu0 %v159
  %v227 = vpop.f32.mrf.mxu0
  %v228 = vadd.f32 0.0, %v227
  %v229 = vpop.f32.mrf.mxu0
  %230 = vdwg.mxu0
  %v231 = vadd.f32 %v152, %v228
  %v232 = vxor.u32 %v231, 2147483648
  %v233 = vmul.f32 %v232, 1.442695
  %v234 = vpow.pop %v233
  %v235 = vadd.f32 %v234, 1.0
  %v236 = vrcp.pop %v235
  %v237 = vmul.f32 1.0, %v236
  %v238 = vtanh.pop %v231
  %v239 = vld [vmem:[#allocation3] sm:$0xf]
  %241 = vrot.lane.b32.xlu0 %v239, 32
  %v242 = vpop.permute.xlu0 %241
  %v244 = vmul.f32 %v237, %v242
  %246 = vrot.lane.b32.xlu0 %v238, 64
  %v247 = vpop.permute.xlu0 %246
  %v249 = vmul.f32 %v237, %v247
  %251 = vrot.lane.b32.xlu0 %v249, 32
  %v252 = vpop.permute.xlu0 %251
  %v254 = vadd.f32 %v244, %v252
  %v255 = vtanh.pop %v254
  %257 = vrot.lane.b32.xlu0 %v255, 64
  %v258 = vpop.permute.xlu0 %257
  %v260 = vmul.f32 %v237, %v258
  %262 = vrot.lane.b32.xlu0 %v254, 96
  %v263 = vpop.permute.xlu0 %262
  %265 = vst.msk [vmem:[#allocation3] sm:$0xf] %vm143, %v263
  %267 = vrot.lane.b32.xlu0 %v260, 32
  %v268 = vpop.permute.xlu0 %267
  %270 = vst.msk [vmem:[#allocation2] sm:$0xf] %vm143, %v268
  %s271 = scalar_lea.vmem %s4, 4
  %272 = vst.msk [vmem:[%s271] sm:$0xf] %vm143, %v268
  %s273 = scalar_lea.vmem %s0, 8
  %v274 = vld [vmem:[%s273] sm:$0xf]
  %v275 = vld [vmem:[#allocation2] sm:$0xf]
  %v276 = vld [vmem:[%s3] sm:$0xff]
  %v277 = vld [vmem:[%s3 + $0x8] sm:$0xff]
  %v278 = vld [vmem:[%s3 + $0x10] sm:$0xff]
  %v279 = vld [vmem:[%s3 + $0x18] sm:$0xff]
  %v281 = vsel %vm35, %v275, 0
  %283 = vmatprep.subr.mxu0 0.0
  %284 = vmatpush1.msra.mxu0 0.0
  %285 = vmatprep.subr.mxu0 0.0
  %286 = vmatpush1.msra.mxu0 0.0
  %287 = vmatprep.subr.mxu0 0.0
  %288 = vmatpush1.msra.mxu0 0.0
  %289 = vmatprep.subr.mxu0 0.0
  %290 = vmatpush1.msra.mxu0 0.0
  %291 = vmatprep.subr.mxu0 0.0
  %292 = vmatpush1.msra.mxu0 0.0
  %293 = vmatprep.subr.mxu0 0.0
  %294 = vmatpush1.msra.mxu0 0.0
  %295 = vmatprep.subr.mxu0 0.0
  %296 = vmatpush1.msra.mxu0 0.0
  %297 = vmatprep.subr.mxu0 0.0
  %298 = vmatpush1.msra.mxu0 0.0
  %299 = vmatprep.subr.mxu0 0.0
  %300 = vmatpush1.msra.mxu0 0.0
  %301 = vmatprep.subr.mxu0 0.0
  %302 = vmatpush1.msra.mxu0 0.0
  %303 = vmatprep.subr.mxu0 0.0
  %304 = vmatpush1.msra.mxu0 0.0
  %305 = vmatprep.subr.mxu0 0.0
  %306 = vmatpush1.msra.mxu0 0.0
  %307 = vmatprep.subr.mxu0 0.0
  %308 = vmatpush1.msra.mxu0 %v279
  %309 = vmatprep.subr.mxu0 0.0
  %310 = vmatpush1.msra.mxu0 %v278
  %311 = vmatprep.subr.mxu0 0.0
  %312 = vmatpush1.msra.mxu0 %v277
  %313 = vmatprep.subr.mxu0 0.0
  %314 = vmatpush1.msra.mxu0 %v276
  %315 = vmatprep.subr.mxu0 0.0
  %316 = vmatpush2.msra.mxu0 0.0
  %317 = vmatprep.subr.mxu0 0.0
  %318 = vmatpush2.msra.mxu0 0.0
  %319 = vmatprep.subr.mxu0 0.0
  %320 = vmatpush2.msra.mxu0 0.0
  %321 = vmatprep.subr.mxu0 0.0
  %322 = vmatpush2.msra.mxu0 0.0
  %323 = vmatprep.subr.mxu0 0.0
  %324 = vmatpush2.msra.mxu0 0.0
  %325 = vmatprep.subr.mxu0 0.0
  %326 = vmatpush2.msra.mxu0 0.0
  %327 = vmatprep.subr.mxu0 0.0
  %328 = vmatpush2.msra.mxu0 0.0
  %329 = vmatprep.subr.mxu0 0.0
  %330 = vmatpush2.msra.mxu0 0.0
  %331 = vmatprep.subr.mxu0 0.0
  %332 = vmatpush2.msra.mxu0 0.0
  %333 = vmatprep.subr.mxu0 0.0
  %334 = vmatpush2.msra.mxu0 0.0
  %335 = vmatprep.subr.mxu0 0.0
  %336 = vmatpush2.msra.mxu0 0.0
  %337 = vmatprep.subr.mxu0 0.0
  %338 = vmatpush2.msra.mxu0 0.0
  %339 = vmatprep.subr.mxu0 0.0
  %340 = vmatpush2.msra.mxu0 0.0
  %341 = vmatprep.subr.mxu0 0.0
  %342 = vmatpush2.msra.mxu0 0.0
  %343 = vmatprep.subr.mxu0 0.0
  %344 = vmatpush2.msra.mxu0 0.0
  %345 = vmatprep.subr.mxu0 0.0
  %346 = vmatpush2.msra.mxu0 0.0
  %347 = vmatprep.mubr.f32.mxu0 0.0
  %348 = vmatmul.mubr.f32.gmra.mxu0 %v281
  %v349 = vpop.f32.mrf.mxu0
  %v350 = vadd.f32 0.0, %v349
  %v351 = vpop.f32.mrf.mxu0
  %352 = vdwg.mxu0
  %v353 = vadd.f32 %v274, %v350
  %v354 = vxor.u32 %v353, 2147483648
  %v355 = vmul.f32 %v354, 1.442695
  %v356 = vpow.pop %v355
  %v357 = vadd.f32 %v356, 1.0
  %v358 = vrcp.pop %v357
  %v359 = vmul.f32 1.0, %v358
  %v360 = vtanh.pop %v353
  %v361 = vld [vmem:[#allocation3] sm:$0xf]
  %363 = vrot.lane.b32.xlu0 %v361, 32
  %v364 = vpop.permute.xlu0 %363
  %v366 = vmul.f32 %v359, %v364
  %368 = vrot.lane.b32.xlu0 %v360, 64
  %v369 = vpop.permute.xlu0 %368
  %v371 = vmul.f32 %v359, %v369
  %373 = vrot.lane.b32.xlu0 %v371, 32
  %v374 = vpop.permute.xlu0 %373
  %v376 = vadd.f32 %v366, %v374
  %v377 = vtanh.pop %v376
  %379 = vrot.lane.b32.xlu0 %v377, 64
  %v380 = vpop.permute.xlu0 %379
  %v382 = vmul.f32 %v359, %v380
  %384 = vrot.lane.b32.xlu0 %v376, 96
  %v385 = vpop.permute.xlu0 %384
  %387 = vst.msk [vmem:[#allocation3] sm:$0xf] %vm143, %v385
  %389 = vrot.lane.b32.xlu0 %v382, 32
  %v390 = vpop.permute.xlu0 %389
  %392 = vst.msk [vmem:[#allocation2] sm:$0xf] %vm143, %v390
  %s393 = scalar_lea.vmem %s4, 8
  %394 = vst.msk [vmem:[%s393] sm:$0xf] %vm143, %v390
  %s395 = scalar_lea.vmem %s0, 12
  %v396 = vld [vmem:[%s395] sm:$0xf]
  %v397 = vld [vmem:[#allocation2] sm:$0xf]
  %v398 = vld [vmem:[%s3] sm:$0xff]
  %v399 = vld [vmem:[%s3 + $0x8] sm:$0xff]
  %v400 = vld [vmem:[%s3 + $0x10] sm:$0xff]
  %v401 = vld [vmem:[%s3 + $0x18] sm:$0xff]
  %v403 = vsel %vm35, %v397, 0
  %405 = vmatprep.subr.mxu0 0.0
  %406 = vmatpush1.msra.mxu0 0.0
  %407 = vmatprep.subr.mxu0 0.0
  %408 = vmatpush1.msra.mxu0 0.0
  %409 = vmatprep.subr.mxu0 0.0
  %410 = vmatpush1.msra.mxu0 0.0
  %411 = vmatprep.subr.mxu0 0.0
  %412 = vmatpush1.msra.mxu0 0.0
  %413 = vmatprep.subr.mxu0 0.0
  %414 = vmatpush1.msra.mxu0 0.0
  %415 = vmatprep.subr.mxu0 0.0
  %416 = vmatpush1.msra.mxu0 0.0
  %417 = vmatprep.subr.mxu0 0.0
  %418 = vmatpush1.msra.mxu0 0.0
  %419 = vmatprep.subr.mxu0 0.0
  %420 = vmatpush1.msra.mxu0 0.0
  %421 = vmatprep.subr.mxu0 0.0
  %422 = vmatpush1.msra.mxu0 0.0
  %423 = vmatprep.subr.mxu0 0.0
  %424 = vmatpush1.msra.mxu0 0.0
  %425 = vmatprep.subr.mxu0 0.0
  %426 = vmatpush1.msra.mxu0 0.0
  %427 = vmatprep.subr.mxu0 0.0
  %428 = vmatpush1.msra.mxu0 0.0
  %429 = vmatprep.subr.mxu0 0.0
  %430 = vmatpush1.msra.mxu0 %v401
  %431 = vmatprep.subr.mxu0 0.0
  %432 = vmatpush1.msra.mxu0 %v400
  %433 = vmatprep.subr.mxu0 0.0
  %434 = vmatpush1.msra.mxu0 %v399
  %435 = vmatprep.subr.mxu0 0.0
  %436 = vmatpush1.msra.mxu0 %v398
  %437 = vmatprep.subr.mxu0 0.0
  %438 = vmatpush2.msra.mxu0 0.0
  %439 = vmatprep.subr.mxu0 0.0
  %440 = vmatpush2.msra.mxu0 0.0
  %441 = vmatprep.subr.mxu0 0.0
  %442 = vmatpush2.msra.mxu0 0.0
  %443 = vmatprep.subr.mxu0 0.0
  %444 = vmatpush2.msra.mxu0 0.0
  %445 = vmatprep.subr.mxu0 0.0
  %446 = vmatpush2.msra.mxu0 0.0
  %447 = vmatprep.subr.mxu0 0.0
  %448 = vmatpush2.msra.mxu0 0.0
  %449 = vmatprep.subr.mxu0 0.0
  %450 = vmatpush2.msra.mxu0 0.0
  %451 = vmatprep.subr.mxu0 0.0
  %452 = vmatpush2.msra.mxu0 0.0
  %453 = vmatprep.subr.mxu0 0.0
  %454 = vmatpush2.msra.mxu0 0.0
  %455 = vmatprep.subr.mxu0 0.0
  %456 = vmatpush2.msra.mxu0 0.0
  %457 = vmatprep.subr.mxu0 0.0
  %458 = vmatpush2.msra.mxu0 0.0
  %459 = vmatprep.subr.mxu0 0.0
  %460 = vmatpush2.msra.mxu0 0.0
  %461 = vmatprep.subr.mxu0 0.0
  %462 = vmatpush2.msra.mxu0 0.0
  %463 = vmatprep.subr.mxu0 0.0
  %464 = vmatpush2.msra.mxu0 0.0
  %465 = vmatprep.subr.mxu0 0.0
  %466 = vmatpush2.msra.mxu0 0.0
  %467 = vmatprep.subr.mxu0 0.0
  %468 = vmatpush2.msra.mxu0 0.0
  %469 = vmatprep.mubr.f32.mxu0 0.0
  %470 = vmatmul.mubr.f32.gmra.mxu0 %v403
  %v471 = vpop.f32.mrf.mxu0
  %v472 = vadd.f32 0.0, %v471
  %v473 = vpop.f32.mrf.mxu0
  %474 = vdwg.mxu0
  %v475 = vadd.f32 %v396, %v472
  %v476 = vxor.u32 %v475, 2147483648
  %v477 = vmul.f32 %v476, 1.442695
  %v478 = vpow.pop %v477
  %v479 = vadd.f32 %v478, 1.0
  %v480 = vrcp.pop %v479
  %v481 = vmul.f32 1.0, %v480
  %v482 = vtanh.pop %v475
  %v483 = vld [vmem:[#allocation3] sm:$0xf]
  %485 = vrot.lane.b32.xlu0 %v483, 32
  %v486 = vpop.permute.xlu0 %485
  %v488 = vmul.f32 %v481, %v486
  %490 = vrot.lane.b32.xlu0 %v482, 64
  %v491 = vpop.permute.xlu0 %490
  %v493 = vmul.f32 %v481, %v491
  %495 = vrot.lane.b32.xlu0 %v493, 32
  %v496 = vpop.permute.xlu0 %495
  %v498 = vadd.f32 %v488, %v496
  %v499 = vtanh.pop %v498
  %501 = vrot.lane.b32.xlu0 %v499, 64
  %v502 = vpop.permute.xlu0 %501
  %v504 = vmul.f32 %v481, %v502
  %506 = vrot.lane.b32.xlu0 %v498, 96
  %v507 = vpop.permute.xlu0 %506
  %509 = vst.msk [vmem:[#allocation3] sm:$0xf] %vm143, %v507
  %511 = vrot.lane.b32.xlu0 %v504, 32
  %v512 = vpop.permute.xlu0 %511
  %514 = vst.msk [vmem:[#allocation2] sm:$0xf] %vm143, %v512
  %s515 = scalar_lea.vmem %s4, 12
  %516 = vst.msk [vmem:[%s515] sm:$0xf] %vm143, %v512
  %s517 = scalar_lea.vmem %s0, 16
  %v518 = vld [vmem:[%s517] sm:$0xf]
  %v519 = vld [vmem:[#allocation2] sm:$0xf]
  %v520 = vld [vmem:[%s3] sm:$0xff]
  %v521 = vld [vmem:[%s3 + $0x8] sm:$0xff]
  %v522 = vld [vmem:[%s3 + $0x10] sm:$0xff]
  %v523 = vld [vmem:[%s3 + $0x18] sm:$0xff]
  %v525 = vsel %vm35, %v519, 0
  %527 = vmatprep.subr.mxu0 0.0
  %528 = vmatpush1.msra.mxu0 0.0
  %529 = vmatprep.subr.mxu0 0.0
  %530 = vmatpush1.msra.mxu0 0.0
  %531 = vmatprep.subr.mxu0 0.0
  %532 = vmatpush1.msra.mxu0 0.0
  %533 = vmatprep.subr.mxu0 0.0
  %534 = vmatpush1.msra.mxu0 0.0
  %535 = vmatprep.subr.mxu0 0.0
  %536 = vmatpush1.msra.mxu0 0.0
  %537 = vmatprep.subr.mxu0 0.0
  %538 = vmatpush1.msra.mxu0 0.0
  %539 = vmatprep.subr.mxu0 0.0
  %540 = vmatpush1.msra.mxu0 0.0
  %541 = vmatprep.subr.mxu0 0.0
  %542 = vmatpush1.msra.mxu0 0.0
  %543 = vmatprep.subr.mxu0 0.0
  %544 = vmatpush1.msra.mxu0 0.0
  %545 = vmatprep.subr.mxu0 0.0
  %546 = vmatpush1.msra.mxu0 0.0
  %547 = vmatprep.subr.mxu0 0.0
  %548 = vmatpush1.msra.mxu0 0.0
  %549 = vmatprep.subr.mxu0 0.0
  %550 = vmatpush1.msra.mxu0 0.0
  %551 = vmatprep.subr.mxu0 0.0
  %552 = vmatpush1.msra.mxu0 %v523
  %553 = vmatprep.subr.mxu0 0.0
  %554 = vmatpush1.msra.mxu0 %v522
  %555 = vmatprep.subr.mxu0 0.0
  %556 = vmatpush1.msra.mxu0 %v521
  %557 = vmatprep.subr.mxu0 0.0
  %558 = vmatpush1.msra.mxu0 %v520
  %559 = vmatprep.subr.mxu0 0.0
  %560 = vmatpush2.msra.mxu0 0.0
  %561 = vmatprep.subr.mxu0 0.0
  %562 = vmatpush2.msra.mxu0 0.0
  %563 = vmatprep.subr.mxu0 0.0
  %564 = vmatpush2.msra.mxu0 0.0
  %565 = vmatprep.subr.mxu0 0.0
  %566 = vmatpush2.msra.mxu0 0.0
  %567 = vmatprep.subr.mxu0 0.0
  %568 = vmatpush2.msra.mxu0 0.0
  %569 = vmatprep.subr.mxu0 0.0
  %570 = vmatpush2.msra.mxu0 0.0
  %571 = vmatprep.subr.mxu0 0.0
  %572 = vmatpush2.msra.mxu0 0.0
  %573 = vmatprep.subr.mxu0 0.0
  %574 = vmatpush2.msra.mxu0 0.0
  %575 = vmatprep.subr.mxu0 0.0
  %576 = vmatpush2.msra.mxu0 0.0
  %577 = vmatprep.subr.mxu0 0.0
  %578 = vmatpush2.msra.mxu0 0.0
  %579 = vmatprep.subr.mxu0 0.0
  %580 = vmatpush2.msra.mxu0 0.0
  %581 = vmatprep.subr.mxu0 0.0
  %582 = vmatpush2.msra.mxu0 0.0
  %583 = vmatprep.subr.mxu0 0.0
  %584 = vmatpush2.msra.mxu0 0.0
  %585 = vmatprep.subr.mxu0 0.0
  %586 = vmatpush2.msra.mxu0 0.0
  %587 = vmatprep.subr.mxu0 0.0
  %588 = vmatpush2.msra.mxu0 0.0
  %589 = vmatprep.subr.mxu0 0.0
  %590 = vmatpush2.msra.mxu0 0.0
  %591 = vmatprep.mubr.f32.mxu0 0.0
  %592 = vmatmul.mubr.f32.gmra.mxu0 %v525
  %v593 = vpop.f32.mrf.mxu0
  %v594 = vadd.f32 0.0, %v593
  %v595 = vpop.f32.mrf.mxu0
  %596 = vdwg.mxu0
  %v597 = vadd.f32 %v518, %v594
  %v598 = vxor.u32 %v597, 2147483648
  %v599 = vmul.f32 %v598, 1.442695
  %v600 = vpow.pop %v599
  %v601 = vadd.f32 %v600, 1.0
  %v602 = vrcp.pop %v601
  %v603 = vmul.f32 1.0, %v602
  %v604 = vtanh.pop %v597
  %v605 = vld [vmem:[#allocation3] sm:$0xf]
  %607 = vrot.lane.b32.xlu0 %v605, 32
  %v608 = vpop.permute.xlu0 %607
  %v610 = vmul.f32 %v603, %v608
  %612 = vrot.lane.b32.xlu0 %v604, 64
  %v613 = vpop.permute.xlu0 %612
  %v615 = vmul.f32 %v603, %v613
  %617 = vrot.lane.b32.xlu0 %v615, 32
  %v618 = vpop.permute.xlu0 %617
  %v620 = vadd.f32 %v610, %v618
  %v621 = vtanh.pop %v620
  %623 = vrot.lane.b32.xlu0 %v621, 64
  %v624 = vpop.permute.xlu0 %623
  %v626 = vmul.f32 %v603, %v624
  %628 = vrot.lane.b32.xlu0 %v620, 96
  %v629 = vpop.permute.xlu0 %628
  %631 = vst.msk [vmem:[#allocation3] sm:$0xf] %vm143, %v629
  %633 = vrot.lane.b32.xlu0 %v626, 32
  %v634 = vpop.permute.xlu0 %633
  %636 = vst.msk [vmem:[#allocation2] sm:$0xf] %vm143, %v634
  %s637 = scalar_lea.vmem %s4, 16
  %638 = vst.msk [vmem:[%s637] sm:$0xf] %vm143, %v634
  %s639 = scalar_lea.vmem %s0, 20
  %v640 = vld [vmem:[%s639] sm:$0xf]
  %v641 = vld [vmem:[#allocation2] sm:$0xf]
  %v642 = vld [vmem:[%s3] sm:$0xff]
  %v643 = vld [vmem:[%s3 + $0x8] sm:$0xff]
  %v644 = vld [vmem:[%s3 + $0x10] sm:$0xff]
  %v645 = vld [vmem:[%s3 + $0x18] sm:$0xff]
  %v647 = vsel %vm35, %v641, 0
  %649 = vmatprep.subr.mxu0 0.0
  %650 = vmatpush1.msra.mxu0 0.0
  %651 = vmatprep.subr.mxu0 0.0
  %652 = vmatpush1.msra.mxu0 0.0
  %653 = vmatprep.subr.mxu0 0.0
  %654 = vmatpush1.msra.mxu0 0.0
  %655 = vmatprep.subr.mxu0 0.0
  %656 = vmatpush1.msra.mxu0 0.0
  %657 = vmatprep.subr.mxu0 0.0
  %658 = vmatpush1.msra.mxu0 0.0
  %659 = vmatprep.subr.mxu0 0.0
  %660 = vmatpush1.msra.mxu0 0.0
  %661 = vmatprep.subr.mxu0 0.0
  %662 = vmatpush1.msra.mxu0 0.0
  %663 = vmatprep.subr.mxu0 0.0
  %664 = vmatpush1.msra.mxu0 0.0
  %665 = vmatprep.subr.mxu0 0.0
  %666 = vmatpush1.msra.mxu0 0.0
  %667 = vmatprep.subr.mxu0 0.0
  %668 = vmatpush1.msra.mxu0 0.0
  %669 = vmatprep.subr.mxu0 0.0
  %670 = vmatpush1.msra.mxu0 0.0
  %671 = vmatprep.subr.mxu0 0.0
  %672 = vmatpush1.msra.mxu0 0.0
  %673 = vmatprep.subr.mxu0 0.0
  %674 = vmatpush1.msra.mxu0 %v645
  %675 = vmatprep.subr.mxu0 0.0
  %676 = vmatpush1.msra.mxu0 %v644
  %677 = vmatprep.subr.mxu0 0.0
  %678 = vmatpush1.msra.mxu0 %v643
  %679 = vmatprep.subr.mxu0 0.0
  %680 = vmatpush1.msra.mxu0 %v642
  %681 = vmatprep.subr.mxu0 0.0
  %682 = vmatpush2.msra.mxu0 0.0
  %683 = vmatprep.subr.mxu0 0.0
  %684 = vmatpush2.msra.mxu0 0.0
  %685 = vmatprep.subr.mxu0 0.0
  %686 = vmatpush2.msra.mxu0 0.0
  %687 = vmatprep.subr.mxu0 0.0
  %688 = vmatpush2.msra.mxu0 0.0
  %689 = vmatprep.subr.mxu0 0.0
  %690 = vmatpush2.msra.mxu0 0.0
  %691 = vmatprep.subr.mxu0 0.0
  %692 = vmatpush2.msra.mxu0 0.0
  %693 = vmatprep.subr.mxu0 0.0
  %694 = vmatpush2.msra.mxu0 0.0
  %695 = vmatprep.subr.mxu0 0.0
  %696 = vmatpush2.msra.mxu0 0.0
  %697 = vmatprep.subr.mxu0 0.0
  %698 = vmatpush2.msra.mxu0 0.0
  %699 = vmatprep.subr.mxu0 0.0
  %700 = vmatpush2.msra.mxu0 0.0
  %701 = vmatprep.subr.mxu0 0.0
  %702 = vmatpush2.msra.mxu0 0.0
  %703 = vmatprep.subr.mxu0 0.0
  %704 = vmatpush2.msra.mxu0 0.0
  %705 = vmatprep.subr.mxu0 0.0
  %706 = vmatpush2.msra.mxu0 0.0
  %707 = vmatprep.subr.mxu0 0.0
  %708 = vmatpush2.msra.mxu0 0.0
  %709 = vmatprep.subr.mxu0 0.0
  %710 = vmatpush2.msra.mxu0 0.0
  %711 = vmatprep.subr.mxu0 0.0
  %712 = vmatpush2.msra.mxu0 0.0
  %713 = vmatprep.mubr.f32.mxu0 0.0
  %714 = vmatmul.mubr.f32.gmra.mxu0 %v647
  %v715 = vpop.f32.mrf.mxu0
  %v716 = vadd.f32 0.0, %v715
  %v717 = vpop.f32.mrf.mxu0
  %718 = vdwg.mxu0
  %v719 = vadd.f32 %v640, %v716
  %v720 = vxor.u32 %v719, 2147483648
  %v721 = vmul.f32 %v720, 1.442695
  %v722 = vpow.pop %v721
  %v723 = vadd.f32 %v722, 1.0
  %v724 = vrcp.pop %v723
  %v725 = vmul.f32 1.0, %v724
  %v726 = vtanh.pop %v719
  %v727 = vld [vmem:[#allocation3] sm:$0xf]
  %729 = vrot.lane.b32.xlu0 %v727, 32
  %v730 = vpop.permute.xlu0 %729
  %v732 = vmul.f32 %v725, %v730
  %734 = vrot.lane.b32.xlu0 %v726, 64
  %v735 = vpop.permute.xlu0 %734
  %v737 = vmul.f32 %v725, %v735
  %739 = vrot.lane.b32.xlu0 %v737, 32
  %v740 = vpop.permute.xlu0 %739
  %v742 = vadd.f32 %v732, %v740
  %v743 = vtanh.pop %v742
  %745 = vrot.lane.b32.xlu0 %v743, 64
  %v746 = vpop.permute.xlu0 %745
  %v748 = vmul.f32 %v725, %v746
  %750 = vrot.lane.b32.xlu0 %v742, 96
  %v751 = vpop.permute.xlu0 %750
  %753 = vst.msk [vmem:[#allocation3] sm:$0xf] %vm143, %v751
  %755 = vrot.lane.b32.xlu0 %v748, 32
  %v756 = vpop.permute.xlu0 %755
  %758 = vst.msk [vmem:[#allocation2] sm:$0xf] %vm143, %v756
  %s759 = scalar_lea.vmem %s4, 20
  %760 = vst.msk [vmem:[%s759] sm:$0xf] %vm143, %v756
  %s761 = scalar_lea.vmem %s0, 24
  %v762 = vld [vmem:[%s761] sm:$0xf]
  %v763 = vld [vmem:[#allocation2] sm:$0xf]
  %v764 = vld [vmem:[%s3] sm:$0xff]
  %v765 = vld [vmem:[%s3 + $0x8] sm:$0xff]
  %v766 = vld [vmem:[%s3 + $0x10] sm:$0xff]
  %v767 = vld [vmem:[%s3 + $0x18] sm:$0xff]
  %v769 = vsel %vm35, %v763, 0
  %771 = vmatprep.subr.mxu0 0.0
  %772 = vmatpush1.msra.mxu0 0.0
  %773 = vmatprep.subr.mxu0 0.0
  %774 = vmatpush1.msra.mxu0 0.0
  %775 = vmatprep.subr.mxu0 0.0
  %776 = vmatpush1.msra.mxu0 0.0
  %777 = vmatprep.subr.mxu0 0.0
  %778 = vmatpush1.msra.mxu0 0.0
  %779 = vmatprep.subr.mxu0 0.0
  %780 = vmatpush1.msra.mxu0 0.0
  %781 = vmatprep.subr.mxu0 0.0
  %782 = vmatpush1.msra.mxu0 0.0
  %783 = vmatprep.subr.mxu0 0.0
  %784 = vmatpush1.msra.mxu0 0.0
  %785 = vmatprep.subr.mxu0 0.0
  %786 = vmatpush1.msra.mxu0 0.0
  %787 = vmatprep.subr.mxu0 0.0
  %788 = vmatpush1.msra.mxu0 0.0
  %789 = vmatprep.subr.mxu0 0.0
  %790 = vmatpush1.msra.mxu0 0.0
  %791 = vmatprep.subr.mxu0 0.0
  %792 = vmatpush1.msra.mxu0 0.0
  %793 = vmatprep.subr.mxu0 0.0
  %794 = vmatpush1.msra.mxu0 0.0
  %795 = vmatprep.subr.mxu0 0.0
  %796 = vmatpush1.msra.mxu0 %v767
  %797 = vmatprep.subr.mxu0 0.0
  %798 = vmatpush1.msra.mxu0 %v766
  %799 = vmatprep.subr.mxu0 0.0
  %800 = vmatpush1.msra.mxu0 %v765
  %801 = vmatprep.subr.mxu0 0.0
  %802 = vmatpush1.msra.mxu0 %v764
  %803 = vmatprep.subr.mxu0 0.0
  %804 = vmatpush2.msra.mxu0 0.0
  %805 = vmatprep.subr.mxu0 0.0
  %806 = vmatpush2.msra.mxu0 0.0
  %807 = vmatprep.subr.mxu0 0.0
  %808 = vmatpush2.msra.mxu0 0.0
  %809 = vmatprep.subr.mxu0 0.0
  %810 = vmatpush2.msra.mxu0 0.0
  %811 = vmatprep.subr.mxu0 0.0
  %812 = vmatpush2.msra.mxu0 0.0
  %813 = vmatprep.subr.mxu0 0.0
  %814 = vmatpush2.msra.mxu0 0.0
  %815 = vmatprep.subr.mxu0 0.0
  %816 = vmatpush2.msra.mxu0 0.0
  %817 = vmatprep.subr.mxu0 0.0
  %818 = vmatpush2.msra.mxu0 0.0
  %819 = vmatprep.subr.mxu0 0.0
  %820 = vmatpush2.msra.mxu0 0.0
  %821 = vmatprep.subr.mxu0 0.0
  %822 = vmatpush2.msra.mxu0 0.0
  %823 = vmatprep.subr.mxu0 0.0
  %824 = vmatpush2.msra.mxu0 0.0
  %825 = vmatprep.subr.mxu0 0.0
  %826 = vmatpush2.msra.mxu0 0.0
  %827 = vmatprep.subr.mxu0 0.0
  %828 = vmatpush2.msra.mxu0 0.0
  %829 = vmatprep.subr.mxu0 0.0
  %830 = vmatpush2.msra.mxu0 0.0
  %831 = vmatprep.subr.mxu0 0.0
  %832 = vmatpush2.msra.mxu0 0.0
  %833 = vmatprep.subr.mxu0 0.0
  %834 = vmatpush2.msra.mxu0 0.0
  %835 = vmatprep.mubr.f32.mxu0 0.0
  %836 = vmatmul.mubr.f32.gmra.mxu0 %v769
  %v837 = vpop.f32.mrf.mxu0
  %v838 = vadd.f32 0.0, %v837
  %v839 = vpop.f32.mrf.mxu0
  %840 = vdwg.mxu0
  %v841 = vadd.f32 %v762, %v838
  %v842 = vxor.u32 %v841, 2147483648
  %v843 = vmul.f32 %v842, 1.442695
  %v844 = vpow.pop %v843
  %v845 = vadd.f32 %v844, 1.0
  %v846 = vrcp.pop %v845
  %v847 = vmul.f32 1.0, %v846
  %v848 = vtanh.pop %v841
  %v849 = vld [vmem:[#allocation3] sm:$0xf]
  %851 = vrot.lane.b32.xlu0 %v849, 32
  %v852 = vpop.permute.xlu0 %851
  %v854 = vmul.f32 %v847, %v852
  %856 = vrot.lane.b32.xlu0 %v848, 64
  %v857 = vpop.permute.xlu0 %856
  %v859 = vmul.f32 %v847, %v857
  %861 = vrot.lane.b32.xlu0 %v859, 32
  %v862 = vpop.permute.xlu0 %861
  %v864 = vadd.f32 %v854, %v862
  %v865 = vtanh.pop %v864
  %867 = vrot.lane.b32.xlu0 %v865, 64
  %v868 = vpop.permute.xlu0 %867
  %v870 = vmul.f32 %v847, %v868
  %872 = vrot.lane.b32.xlu0 %v864, 96
  %v873 = vpop.permute.xlu0 %872
  %875 = vst.msk [vmem:[#allocation3] sm:$0xf] %vm143, %v873
  %877 = vrot.lane.b32.xlu0 %v870, 32
  %v878 = vpop.permute.xlu0 %877
  %880 = vst.msk [vmem:[#allocation2] sm:$0xf] %vm143, %v878
  %s881 = scalar_lea.vmem %s4, 24
  %882 = vst.msk [vmem:[%s881] sm:$0xf] %vm143, %v878
  %s883 = scalar_lea.vmem %s0, 28
  %v884 = vld [vmem:[%s883] sm:$0xf]
  %v885 = vld [vmem:[#allocation2] sm:$0xf]
  %v886 = vld [vmem:[%s3] sm:$0xff]
  %v887 = vld [vmem:[%s3 + $0x8] sm:$0xff]
  %v888 = vld [vmem:[%s3 + $0x10] sm:$0xff]
  %v889 = vld [vmem:[%s3 + $0x18] sm:$0xff]
  %v891 = vsel %vm35, %v885, 0
  %893 = vmatprep.subr.mxu0 0.0
  %894 = vmatpush1.msra.mxu0 0.0
  %895 = vmatprep.subr.mxu0 0.0
  %896 = vmatpush1.msra.mxu0 0.0
  %897 = vmatprep.subr.mxu0 0.0
  %898 = vmatpush1.msra.mxu0 0.0
  %899 = vmatprep.subr.mxu0 0.0
  %900 = vmatpush1.msra.mxu0 0.0
  %901 = vmatprep.subr.mxu0 0.0
  %902 = vmatpush1.msra.mxu0 0.0
  %903 = vmatprep.subr.mxu0 0.0
  %904 = vmatpush1.msra.mxu0 0.0
  %905 = vmatprep.subr.mxu0 0.0
  %906 = vmatpush1.msra.mxu0 0.0
  %907 = vmatprep.subr.mxu0 0.0
  %908 = vmatpush1.msra.mxu0 0.0
  %909 = vmatprep.subr.mxu0 0.0
  %910 = vmatpush1.msra.mxu0 0.0
  %911 = vmatprep.subr.mxu0 0.0
  %912 = vmatpush1.msra.mxu0 0.0
  %913 = vmatprep.subr.mxu0 0.0
  %914 = vmatpush1.msra.mxu0 0.0
  %915 = vmatprep.subr.mxu0 0.0
  %916 = vmatpush1.msra.mxu0 0.0
  %917 = vmatprep.subr.mxu0 0.0
  %918 = vmatpush1.msra.mxu0 %v889
  %919 = vmatprep.subr.mxu0 0.0
  %920 = vmatpush1.msra.mxu0 %v888
  %921 = vmatprep.subr.mxu0 0.0
  %922 = vmatpush1.msra.mxu0 %v887
  %923 = vmatprep.subr.mxu0 0.0
  %924 = vmatpush1.msra.mxu0 %v886
  %925 = vmatprep.subr.mxu0 0.0
  %926 = vmatpush2.msra.mxu0 0.0
  %927 = vmatprep.subr.mxu0 0.0
  %928 = vmatpush2.msra.mxu0 0.0
  %929 = vmatprep.subr.mxu0 0.0
  %930 = vmatpush2.msra.mxu0 0.0
  %931 = vmatprep.subr.mxu0 0.0
  %932 = vmatpush2.msra.mxu0 0.0
  %933 = vmatprep.subr.mxu0 0.0
  %934 = vmatpush2.msra.mxu0 0.0
  %935 = vmatprep.subr.mxu0 0.0
  %936 = vmatpush2.msra.mxu0 0.0
  %937 = vmatprep.subr.mxu0 0.0
  %938 = vmatpush2.msra.mxu0 0.0
  %939 = vmatprep.subr.mxu0 0.0
  %940 = vmatpush2.msra.mxu0 0.0
  %941 = vmatprep.subr.mxu0 0.0
  %942 = vmatpush2.msra.mxu0 0.0
  %943 = vmatprep.subr.mxu0 0.0
  %944 = vmatpush2.msra.mxu0 0.0
  %945 = vmatprep.subr.mxu0 0.0
  %946 = vmatpush2.msra.mxu0 0.0
  %947 = vmatprep.subr.mxu0 0.0
  %948 = vmatpush2.msra.mxu0 0.0
  %949 = vmatprep.subr.mxu0 0.0
  %950 = vmatpush2.msra.mxu0 0.0
  %951 = vmatprep.subr.mxu0 0.0
  %952 = vmatpush2.msra.mxu0 0.0
  %953 = vmatprep.subr.mxu0 0.0
  %954 = vmatpush2.msra.mxu0 0.0
  %955 = vmatprep.subr.mxu0 0.0
  %956 = vmatpush2.msra.mxu0 0.0
  %957 = vmatprep.mubr.f32.mxu0 0.0
  %958 = vmatmul.mubr.f32.gmra.mxu0 %v891
  %v959 = vpop.f32.mrf.mxu0
  %v960 = vadd.f32 0.0, %v959
  %v961 = vpop.f32.mrf.mxu0
  %962 = vdwg.mxu0
  %v963 = vadd.f32 %v884, %v960
  %v964 = vxor.u32 %v963, 2147483648
  %v965 = vmul.f32 %v964, 1.442695
  %v966 = vpow.pop %v965
  %v967 = vadd.f32 %v966, 1.0
  %v968 = vrcp.pop %v967
  %v969 = vmul.f32 1.0, %v968
  %v970 = vtanh.pop %v963
  %v971 = vld [vmem:[#allocation3] sm:$0xf]
  %973 = vrot.lane.b32.xlu0 %v971, 32
  %v974 = vpop.permute.xlu0 %973
  %v976 = vmul.f32 %v969, %v974
  %978 = vrot.lane.b32.xlu0 %v970, 64
  %v979 = vpop.permute.xlu0 %978
  %v981 = vmul.f32 %v969, %v979
  %983 = vrot.lane.b32.xlu0 %v981, 32
  %v984 = vpop.permute.xlu0 %983
  %v986 = vadd.f32 %v976, %v984
  %v987 = vtanh.pop %v986
  %989 = vrot.lane.b32.xlu0 %v987, 64
  %v990 = vpop.permute.xlu0 %989
  %v992 = vmul.f32 %v969, %v990
  %994 = vrot.lane.b32.xlu0 %v986, 96
  %v995 = vpop.permute.xlu0 %994
  %997 = vst.msk [vmem:[#allocation3] sm:$0xf] %vm143, %v995
  %999 = vrot.lane.b32.xlu0 %v992, 32
  %v1000 = vpop.permute.xlu0 %999
  %1002 = vst.msk [vmem:[#allocation2] sm:$0xf] %vm143, %v1000
  %s1003 = scalar_lea.vmem %s4, 28
  %1004 = vst.msk [vmem:[%s1003] sm:$0xf] %vm143, %v1000
  %v1005 = vld [vmem:[#allocation2] sm:$0xf]
  %1006 = vst.msk [vmem:[%s5] sm:$0xf] %vm143, %v1005
  %v1007 = vld [vmem:[#allocation3] sm:$0xf]
  %1008 = vst.msk [vmem:[%s6] sm:$0xf] %vm143, %v1007
  // Predicated region
  $region22: #{model_forward.6} parent=0 // pred_check
    _
  $region23: #{model_forward.6} parent=0 // pred_check_branch
    %1010 = sbr.rel (0) target = $region25
  $region24: #{model_forward.6} parent=0 // pred_region
    _
  $region25: #{model_forward.6} parent=0 // pred_fallthru
    _
  // Predicated region
  $region26: #{model_forward.6} parent=0 // pred_check
    _
  $region27: #{model_forward.6} parent=0 // pred_check_branch
    %1012 = sbr.rel (0) target = $region29
  $region28: #{model_forward.6} parent=0 // pred_region
    _
  $region29: #{model_forward.6} parent=0 // pred_fallthru
    _
  // Predicated region
  $region30: #{model_forward.6} parent=0 // pred_check
    _
  $region31: #{model_forward.6} parent=0 // pred_check_branch
    %1014 = sbr.rel (0) target = $region33
  $region32: #{model_forward.6} parent=0 // pred_region
    _
  $region33: #{model_forward.6} parent=0 // pred_fallthru
    _
  // Predicated region
  $region34: #{model_forward.6} parent=0 // pred_check
    _
  $region35: #{model_forward.6} parent=0 // pred_check_branch
    %1016 = sbr.rel (0) target = $region37
  $region36: #{model_forward.6} parent=0 // pred_region
    _
  $region37: #{model_forward.6} parent=0 // pred_fallthru
    _
  // Predicated region
  $region38: #{model_forward.6} parent=0 // pred_check
    _
  $region39: #{model_forward.6} parent=0 // pred_check_branch
    %1018 = sbr.rel (0) target = $region41
  $region40: #{model_forward.6} parent=0 // pred_region
    _
  $region41: #{model_forward.6} parent=0 // pred_fallthru
    _
  // Predicated region
  $region42: #{model_forward.6} parent=0 // pred_check
    _
  $region43: #{model_forward.6} parent=0 // pred_check_branch
    %1020 = sbr.rel (0) target = $region45
  $region44: #{model_forward.6} parent=0 // pred_region
    _
  $region45: #{model_forward.6} parent=0 // pred_fallthru
    _

</llo_original>
